<compile_context>
chip_gen: v7x
topology: tpu7x:2x2x1
jax: 0.10.0
libtpu: 0.0.40
codegen_flags: <defaults>
</compile_context>

<pallas_src>
import jax
import jax.numpy as jnp
from jax.experimental import pallas as pl
from jax.experimental.pallas import tpu as pltpu

LANE = 128  # lane-dense output slab width


def dual_encoder_kernel(ctx_ref, rsp_ref, w_ih_ref, w_hh_ref, b_ref, m_ref,
                        score_ref):
    Bb, T, D = ctx_ref.shape
    H = w_hh_ref.shape[0]

    w_ih = w_ih_ref[...]          # (D, H)
    w_hh = w_hh_ref[...]          # (H, H) — identical RHS for all steps/encoders
    b = b_ref[...]                # (1, H)

    # ---- Fused encoders: stack ctx & rsp into one (2*Bb*T, D) batch ----
    x = jnp.concatenate(
        [ctx_ref[...].reshape(Bb * T, D), rsp_ref[...].reshape(Bb * T, D)],
        axis=0)                                                   # (2*Bb*T, D)

    # ---- Hoisted input projection: one big MXU matmul + one bias add ----
    x_proj = (jnp.dot(x, w_ih, preferred_element_type=jnp.float32)
              + b).reshape(2 * Bb, T, H)                          # (2Bb, T, H)

    # ---- Recurrence: h_t = tanh(x_proj[:, t] + h_{t-1} @ W_hh) ----
    # Step 0: previous hidden is zero, skip the wasted zero-matmul.
    h = jnp.tanh(x_proj[:, 0, :])                                 # (2Bb, H)
    for t in range(1, T):  # T static & small -> unrolled; W_hh stays resident
        h = jnp.tanh(x_proj[:, t, :]
                     + jnp.dot(h, w_hh, preferred_element_type=jnp.float32))

    c = h[:Bb]                    # context last hidden   (Bb, H)
    r = h[Bb:]                    # response last hidden  (Bb, H)

    # score[b] = c[b] @ M @ r[b]   (torch: mm then bmm -> (B, 1))
    cm = jnp.dot(c, m_ref[...], preferred_element_type=jnp.float32)  # (Bb, H)
    score = jnp.sum(cm * r, axis=-1, keepdims=True)                  # (Bb, 1)

    # Lane-dense (unmasked) store: broadcast score across the 128-lane slab;
    # the wrapper slices column 0.
    score_ref[...] = jnp.broadcast_to(score, score_ref.shape)


def dual_encoder(ctx, rsp, w_ih, w_hh, b, M, *, block_b=None):
    B, T, D = ctx.shape
    H = w_hh.shape[0]
    if block_b is None:
        block_b = min(B, 8)
    assert B % block_b == 0, "batch must be a multiple of the batch block"

    grid = (B // block_b,)
    slab = pl.pallas_call(
        dual_encoder_kernel,
        out_shape=jax.ShapeDtypeStruct((B, LANE), jnp.float32),
        grid_spec=pltpu.PrefetchScalarGridSpec(
            num_scalar_prefetch=0,
            grid=grid,
            in_specs=[
                pl.BlockSpec((block_b, T, D), lambda i: (i, 0, 0)),   # ctx
                pl.BlockSpec((block_b, T, D), lambda i: (i, 0, 0)),   # rsp
                pl.BlockSpec((D, H), lambda i: (0, 0)),               # w_ih
                pl.BlockSpec((H, H), lambda i: (0, 0)),               # w_hh
                pl.BlockSpec((1, H), lambda i: (0, 0)),               # bias
                pl.BlockSpec((H, H), lambda i: (0, 0)),               # M
            ],
            out_specs=pl.BlockSpec((block_b, LANE), lambda i: (i, 0)),
        ),
        compiler_params=pltpu.CompilerParams(
            dimension_semantics=("parallel",)),
    )(ctx, rsp, w_ih, w_hh, b, M)
    return slab[:, :1]            # (B, 1), matching torch .view(-1, 1)


def _xavier_normal(key, shape):
    fan_in, fan_out = shape[0], shape[1]
    std = (2.0 / (fan_in + fan_out)) ** 0.5
    return std * jax.random.normal(key, shape, dtype=jnp.float32)


if __name__ == "__main__":
    B, T, D, H = 8, 8, 32, 32   # batch, seq, input dim, hidden_size

    key = jax.random.PRNGKey(0)
    k_ctx, k_rsp, k_wih, k_whh, k_b, k_m = jax.random.split(key, 6)

    # synthetic encoder inputs (the original encoder is an injected module)
    ctx = jax.random.normal(k_ctx, (B, T, D), dtype=jnp.float32)
    rsp = jax.random.normal(k_rsp, (B, T, D), dtype=jnp.float32)

    # deterministic parameters
    w_ih = _xavier_normal(k_wih, (D, H))
    w_hh = _xavier_normal(k_whh, (H, H))
    b = 0.01 * jax.random.normal(k_b, (1, H), dtype=jnp.float32)
    M = _xavier_normal(k_m, (H, H))   # init.xavier_normal(M) in the module

    score = dual_encoder(ctx, rsp, w_ih, w_hh, b, M)
    score = jax.block_until_ready(score)

    # pure-JAX reference check (unfused / unhoisted definition)
    def ref_encode(x):
        h = jnp.zeros((B, H), jnp.float32)
        for t in range(T):
            h = jnp.tanh(x[:, t, :] @ w_ih + h @ w_hh + b)
        return h

    c_ref = ref_encode(ctx)
    r_ref = ref_encode(rsp)
    score_ref = jnp.sum((c_ref @ M) * r_ref, axis=-1, keepdims=True)
    assert score.shape == (B, 1)
    assert jnp.allclose(score, score_ref, atol=1e-4, rtol=1e-4)

    print("KERNEL_OK")
</pallas_src>

<mosaic_0001>
module attributes {stable_mosaic.version = 11 : i64} {
  func.func @dual_encoder_kernel(%arg0: i32, %arg1: memref<8x8x32xf32, #tpu.memory_space<vmem>>, %arg2: memref<8x8x32xf32, #tpu.memory_space<vmem>>, %arg3: memref<32x32xf32, #tpu.memory_space<vmem>>, %arg4: memref<32x32xf32, #tpu.memory_space<vmem>>, %arg5: memref<1x32xf32, #tpu.memory_space<vmem>>, %arg6: memref<32x32xf32, #tpu.memory_space<vmem>>, %arg7: memref<8x128xf32, #tpu.memory_space<vmem>>) attributes {dimension_semantics = [#tpu.dimension_semantics<parallel>], iteration_bounds = array<i64: 1>, scalar_prefetch = 0 : i64, scratch_operands = 0 : i64, tpu.core_type = #tpu.core_type<tc>, window_params = [{transform_indices = @transform_0, window_bounds = array<i64: 8, 8, 32>}, {transform_indices = @transform_1, window_bounds = array<i64: 8, 8, 32>}, {pipeline_mode = #tpu.pipeline_mode<synchronous>, transform_indices = @transform_2, window_bounds = array<i64: 32, 32>}, {pipeline_mode = #tpu.pipeline_mode<synchronous>, transform_indices = @transform_3, window_bounds = array<i64: 32, 32>}, {pipeline_mode = #tpu.pipeline_mode<synchronous>, transform_indices = @transform_4, window_bounds = array<i64: 1, 32>}, {pipeline_mode = #tpu.pipeline_mode<synchronous>, transform_indices = @transform_5, window_bounds = array<i64: 32, 32>}, {transform_indices = @transform_6, window_bounds = array<i64: 8, 128>}]} {
    %c0 = arith.constant 0 : index
    %c0_0 = arith.constant 0 : index
    %0 = vector.load %arg3[%c0, %c0_0] : memref<32x32xf32, #tpu.memory_space<vmem>>, vector<32x32xf32>
    %c0_1 = arith.constant 0 : index
    %c0_2 = arith.constant 0 : index
    %1 = vector.load %arg4[%c0_1, %c0_2] : memref<32x32xf32, #tpu.memory_space<vmem>>, vector<32x32xf32>
    %c0_3 = arith.constant 0 : index
    %c0_4 = arith.constant 0 : index
    %2 = vector.load %arg5[%c0_3, %c0_4] : memref<1x32xf32, #tpu.memory_space<vmem>>, vector<1x32xf32>
    %c0_5 = arith.constant 0 : index
    %c0_6 = arith.constant 0 : index
    %c0_7 = arith.constant 0 : index
    %3 = vector.load %arg1[%c0_5, %c0_6, %c0_7] : memref<8x8x32xf32, #tpu.memory_space<vmem>>, vector<8x8x32xf32>
    %4 = vector.shape_cast %3 : vector<8x8x32xf32> to vector<64x32xf32>
    %c0_8 = arith.constant 0 : index
    %c0_9 = arith.constant 0 : index
    %c0_10 = arith.constant 0 : index
    %5 = vector.load %arg2[%c0_8, %c0_9, %c0_10] : memref<8x8x32xf32, #tpu.memory_space<vmem>>, vector<8x8x32xf32>
    %6 = vector.shape_cast %5 : vector<8x8x32xf32> to vector<64x32xf32>
    %7 = tpu.concatenate %4, %6 in 0 : vector<64x32xf32>, vector<64x32xf32> -> vector<128x32xf32>
    %cst = arith.constant dense<0.000000e+00> : vector<128x32xf32>
    %8 = tpu.matmul %7, %0, %cst {dimension_numbers = #tpu.dot_dimension_numbers<[1], [0], [0], [1], [0, 0, 1, 1], [], []>} : vector<128x32xf32>, vector<32x32xf32>, vector<128x32xf32> -> vector<128x32xf32>
    %9 = vector.broadcast %2 : vector<1x32xf32> to vector<128x32xf32>
    %10 = arith.addf %8, %9 : vector<128x32xf32>
    %11 = vector.shape_cast %10 : vector<128x32xf32> to vector<16x8x32xf32>
    %12 = vector.extract_strided_slice %11 {offsets = [0, 0, 0], sizes = [16, 1, 32], strides = [1, 1, 1]} : vector<16x8x32xf32> to vector<16x1x32xf32>
    %13 = vector.shape_cast %12 : vector<16x1x32xf32> to vector<16x32xf32>
    %14 = math.tanh %13 : vector<16x32xf32>
    %15 = vector.extract_strided_slice %11 {offsets = [0, 1, 0], sizes = [16, 1, 32], strides = [1, 1, 1]} : vector<16x8x32xf32> to vector<16x1x32xf32>
    %16 = vector.shape_cast %15 : vector<16x1x32xf32> to vector<16x32xf32>
    %cst_11 = arith.constant dense<0.000000e+00> : vector<16x32xf32>
    %17 = tpu.matmul %14, %1, %cst_11 {dimension_numbers = #tpu.dot_dimension_numbers<[1], [0], [0], [1], [0, 0, 1, 1], [], []>} : vector<16x32xf32>, vector<32x32xf32>, vector<16x32xf32> -> vector<16x32xf32>
    %18 = arith.addf %16, %17 : vector<16x32xf32>
    %19 = math.tanh %18 : vector<16x32xf32>
    %20 = vector.extract_strided_slice %11 {offsets = [0, 2, 0], sizes = [16, 1, 32], strides = [1, 1, 1]} : vector<16x8x32xf32> to vector<16x1x32xf32>
    %21 = vector.shape_cast %20 : vector<16x1x32xf32> to vector<16x32xf32>
    %cst_12 = arith.constant dense<0.000000e+00> : vector<16x32xf32>
    %22 = tpu.matmul %19, %1, %cst_12 {dimension_numbers = #tpu.dot_dimension_numbers<[1], [0], [0], [1], [0, 0, 1, 1], [], []>} : vector<16x32xf32>, vector<32x32xf32>, vector<16x32xf32> -> vector<16x32xf32>
    %23 = arith.addf %21, %22 : vector<16x32xf32>
    %24 = math.tanh %23 : vector<16x32xf32>
    %25 = vector.extract_strided_slice %11 {offsets = [0, 3, 0], sizes = [16, 1, 32], strides = [1, 1, 1]} : vector<16x8x32xf32> to vector<16x1x32xf32>
    %26 = vector.shape_cast %25 : vector<16x1x32xf32> to vector<16x32xf32>
    %cst_13 = arith.constant dense<0.000000e+00> : vector<16x32xf32>
    %27 = tpu.matmul %24, %1, %cst_13 {dimension_numbers = #tpu.dot_dimension_numbers<[1], [0], [0], [1], [0, 0, 1, 1], [], []>} : vector<16x32xf32>, vector<32x32xf32>, vector<16x32xf32> -> vector<16x32xf32>
    %28 = arith.addf %26, %27 : vector<16x32xf32>
    %29 = math.tanh %28 : vector<16x32xf32>
    %30 = vector.extract_strided_slice %11 {offsets = [0, 4, 0], sizes = [16, 1, 32], strides = [1, 1, 1]} : vector<16x8x32xf32> to vector<16x1x32xf32>
    %31 = vector.shape_cast %30 : vector<16x1x32xf32> to vector<16x32xf32>
    %cst_14 = arith.constant dense<0.000000e+00> : vector<16x32xf32>
    %32 = tpu.matmul %29, %1, %cst_14 {dimension_numbers = #tpu.dot_dimension_numbers<[1], [0], [0], [1], [0, 0, 1, 1], [], []>} : vector<16x32xf32>, vector<32x32xf32>, vector<16x32xf32> -> vector<16x32xf32>
    %33 = arith.addf %31, %32 : vector<16x32xf32>
    %34 = math.tanh %33 : vector<16x32xf32>
    %35 = vector.extract_strided_slice %11 {offsets = [0, 5, 0], sizes = [16, 1, 32], strides = [1, 1, 1]} : vector<16x8x32xf32> to vector<16x1x32xf32>
    %36 = vector.shape_cast %35 : vector<16x1x32xf32> to vector<16x32xf32>
    %cst_15 = arith.constant dense<0.000000e+00> : vector<16x32xf32>
    %37 = tpu.matmul %34, %1, %cst_15 {dimension_numbers = #tpu.dot_dimension_numbers<[1], [0], [0], [1], [0, 0, 1, 1], [], []>} : vector<16x32xf32>, vector<32x32xf32>, vector<16x32xf32> -> vector<16x32xf32>
    %38 = arith.addf %36, %37 : vector<16x32xf32>
    %39 = math.tanh %38 : vector<16x32xf32>
    %40 = vector.extract_strided_slice %11 {offsets = [0, 6, 0], sizes = [16, 1, 32], strides = [1, 1, 1]} : vector<16x8x32xf32> to vector<16x1x32xf32>
    %41 = vector.shape_cast %40 : vector<16x1x32xf32> to vector<16x32xf32>
    %cst_16 = arith.constant dense<0.000000e+00> : vector<16x32xf32>
    %42 = tpu.matmul %39, %1, %cst_16 {dimension_numbers = #tpu.dot_dimension_numbers<[1], [0], [0], [1], [0, 0, 1, 1], [], []>} : vector<16x32xf32>, vector<32x32xf32>, vector<16x32xf32> -> vector<16x32xf32>
    %43 = arith.addf %41, %42 : vector<16x32xf32>
    %44 = math.tanh %43 : vector<16x32xf32>
    %45 = vector.extract_strided_slice %11 {offsets = [0, 7, 0], sizes = [16, 1, 32], strides = [1, 1, 1]} : vector<16x8x32xf32> to vector<16x1x32xf32>
    %46 = vector.shape_cast %45 : vector<16x1x32xf32> to vector<16x32xf32>
    %cst_17 = arith.constant dense<0.000000e+00> : vector<16x32xf32>
    %47 = tpu.matmul %44, %1, %cst_17 {dimension_numbers = #tpu.dot_dimension_numbers<[1], [0], [0], [1], [0, 0, 1, 1], [], []>} : vector<16x32xf32>, vector<32x32xf32>, vector<16x32xf32> -> vector<16x32xf32>
    %48 = arith.addf %46, %47 : vector<16x32xf32>
    %49 = math.tanh %48 : vector<16x32xf32>
    %50 = vector.extract_strided_slice %49 {offsets = [0, 0], sizes = [8, 32], strides = [1, 1]} : vector<16x32xf32> to vector<8x32xf32>
    %51 = vector.extract_strided_slice %49 {offsets = [8, 0], sizes = [8, 32], strides = [1, 1]} : vector<16x32xf32> to vector<8x32xf32>
    %c0_18 = arith.constant 0 : index
    %c0_19 = arith.constant 0 : index
    %52 = vector.load %arg6[%c0_18, %c0_19] : memref<32x32xf32, #tpu.memory_space<vmem>>, vector<32x32xf32>
    %cst_20 = arith.constant dense<0.000000e+00> : vector<8x32xf32>
    %53 = tpu.matmul %50, %52, %cst_20 {dimension_numbers = #tpu.dot_dimension_numbers<[1], [0], [0], [1], [0, 0, 1, 1], [], []>} : vector<8x32xf32>, vector<32x32xf32>, vector<8x32xf32> -> vector<8x32xf32>
    %54 = arith.mulf %53, %51 : vector<8x32xf32>
    %cst_21 = arith.constant dense<0.000000e+00> : vector<8xf32>
    %55 = vector.multi_reduction <add>, %54, %cst_21 [1] : vector<8x32xf32> to vector<8xf32>
    %56 = vector.shape_cast %55 : vector<8xf32> to vector<8x1xf32>
    %57 = vector.shape_cast %56 : vector<8x1xf32> to vector<8x1xf32>
    %58 = vector.broadcast %57 : vector<8x1xf32> to vector<8x128xf32>
    %c0_22 = arith.constant 0 : index
    %c0_23 = arith.constant 0 : index
    %59 = vector.load %arg7[%c0_22, %c0_23] : memref<8x128xf32, #tpu.memory_space<vmem>>, vector<8x128xf32>
    tpu.vector_store %arg7[%c0_22, %c0_23], %58 {strides = array<i32>} : memref<8x128xf32, #tpu.memory_space<vmem>>, vector<8x128xf32>,
    return
  }
  func.func @transform_0(%arg0: i32) -> (i32, i32, i32) {
    %c0_i32 = arith.constant 0 : i32
    %c0_i32_0 = arith.constant 0 : i32
    %c0_i32_1 = arith.constant 0 : i32
    return %arg0, %c0_i32, %c0_i32_0 : i32, i32, i32
  }
  func.func @transform_1(%arg0: i32) -> (i32, i32, i32) {
    %c0_i32 = arith.constant 0 : i32
    %c0_i32_0 = arith.constant 0 : i32
    %c0_i32_1 = arith.constant 0 : i32
    return %arg0, %c0_i32, %c0_i32_0 : i32, i32, i32
  }
  func.func @transform_2(%arg0: i32) -> (i32, i32) {
    %c0_i32 = arith.constant 0 : i32
    %c0_i32_0 = arith.constant 0 : i32
    %c0_i32_1 = arith.constant 0 : i32
    return %c0_i32, %c0_i32_0 : i32, i32
  }
  func.func @transform_3(%arg0: i32) -> (i32, i32) {
    %c0_i32 = arith.constant 0 : i32
    %c0_i32_0 = arith.constant 0 : i32
    %c0_i32_1 = arith.constant 0 : i32
    return %c0_i32, %c0_i32_0 : i32, i32
  }
  func.func @transform_4(%arg0: i32) -> (i32, i32) {
    %c0_i32 = arith.constant 0 : i32
    %c0_i32_0 = arith.constant 0 : i32
    %c0_i32_1 = arith.constant 0 : i32
    return %c0_i32, %c0_i32_0 : i32, i32
  }
  func.func @transform_5(%arg0: i32) -> (i32, i32) {
    %c0_i32 = arith.constant 0 : i32
    %c0_i32_0 = arith.constant 0 : i32
    %c0_i32_1 = arith.constant 0 : i32
    return %c0_i32, %c0_i32_0 : i32, i32
  }
  func.func @transform_6(%arg0: i32) -> (i32, i32) {
    %c0_i32 = arith.constant 0 : i32
    %c0_i32_0 = arith.constant 0 : i32
    return %arg0, %c0_i32 : i32, i32
  }
}

</mosaic_0001>

<llo_original>
// kernel: tpu_custom_call.1
$region0: #{tpu_custom_call.1}
  #allocation0 [shape = 'u32[]', space=smem, size = 0x4, offset = 0x4, fixed_abs, tag = 'smem constant byte address 0x4 - core index']
  #allocation1 [shape = 'u32[144,128]{1,0:T(1,128)}', space=vmem, size = 0x12000, scoped, tag = 'internal scratch']
  %s0 = inlined_call_operand.hbm [shape: f32[8,8,32], index: 0, kind: input, shape index: {}]
  %s1 = inlined_call_operand.hbm [shape: f32[8,8,32], index: 1, kind: input, shape index: {}]
  %s2 = inlined_call_operand.hbm [shape: f32[32,32], index: 2, kind: input, shape index: {}]
  %s3 = inlined_call_operand.hbm [shape: f32[32,32], index: 3, kind: input, shape index: {}]
  %s4 = inlined_call_operand.vmem [shape: f32[1,32], index: 4, kind: input, shape index: {}]
  %s5 = inlined_call_operand.hbm [shape: f32[32,32], index: 5, kind: input, shape index: {}]
  %s6 = inlined_call_operand.hbm [shape: f32[8,128], index: 6, kind: output, shape index: {}]
  %s7 = sld [smem:[#allocation0]]
  $region54: #{tpu_custom_call.1} parent=0
    _
  %s9 = ssub.s32 1, %s7
  %s10 = scalar_select 0, %s9, %s7
  $region1: #{tpu_custom_call.1} parent=0
    #allocation2 [shape = 'u8[32768]{0}', space=vmem, size = 0x8000, scoped, tag = 'input window, operand 0, single buffered']
    #allocation3 [shape = 's32[1]{0}', space=sflag, size = 0x4, scoped, tag = 'scoped memory for tpu_custom_call.1']
    #allocation4 [shape = 's32[1]{0}', space=sflag, size = 0x4, scoped, tag = 'scoped memory for tpu_custom_call.1']
    #allocation5 [shape = 'u8[32768]{0}', space=vmem, size = 0x8000, scoped, tag = 'input window, operand 1, single buffered']
    #allocation6 [shape = 's32[1]{0}', space=sflag, size = 0x4, scoped, tag = 'scoped memory for tpu_custom_call.1']
    #allocation7 [shape = 'u8[16384]{0}', space=vmem, size = 0x4000, scoped, tag = 'input window, operand 2, single buffered']
    #allocation8 [shape = 'u8[16384]{0}', space=vmem, size = 0x4000, scoped, tag = 'input window, operand 3, single buffered']
    #allocation9 [shape = 's32[1]{0}', space=sflag, size = 0x4, scoped, tag = 'scoped memory for tpu_custom_call.1']
    #allocation10 [shape = 'u8[16384]{0}', space=vmem, size = 0x4000, scoped, tag = 'input window, operand 5, single buffered']
    #allocation11 [shape = 'u8[4096]{0}', space=vmem, size = 0x1000, scoped, tag = 'output window, operand 0, single buffered']
    %11 = vsyncpa [#allocation3], 0
    %12 = vsyncpa [#allocation6], 0
    %13 = vsyncpa [#allocation9], 0
    %14 = vsyncpa [#allocation4], 0
    // Predicated region
    $region2: #{tpu_custom_call.1} parent=1 // pred_check
      _
    $region3: #{tpu_custom_call.1} parent=1 // pred_check_branch
      %16 = sbr.rel (0) target = $region5
    $region4: #{tpu_custom_call.1} parent=1 // pred_region
      %s18 = ssub.s32 1024, 1024
      %19 = vsyncadd [#allocation3], %s18
      %s20 = sshll.u32 [#allocation2], 4
      %s21 = int_to_ptr.vmem [resolvable:$true] %s20
      %26 = dma.hbm_to_vmem [thread:$0]  %s0, 1024, %s21, [#allocation3], 128, 128, 8
    $region5: #{tpu_custom_call.1} parent=1 // pred_fallthru
      _
    // Predicated region
    $region6: #{tpu_custom_call.1} parent=1 // pred_check
      _
    $region7: #{tpu_custom_call.1} parent=1 // pred_check_branch
      %28 = sbr.rel (0) target = $region9
    $region8: #{tpu_custom_call.1} parent=1 // pred_region
      %s30 = ssub.s32 1024, 1024
      %31 = vsyncadd [#allocation6], %s30
      %s32 = sshll.u32 [#allocation5], 4
      %s33 = int_to_ptr.vmem [resolvable:$true] %s32
      %38 = dma.hbm_to_vmem [thread:$0]  %s1, 1024, %s33, [#allocation6], 128, 128, 8
    $region9: #{tpu_custom_call.1} parent=1 // pred_fallthru
      _
    // Predicated region
    $region10: #{tpu_custom_call.1} parent=1 // pred_check
      _
    $region11: #{tpu_custom_call.1} parent=1 // pred_check_branch
      %40 = sbr.rel (0) target = $region13
    $region12: #{tpu_custom_call.1} parent=1 // pred_region
      %s42 = ssub.s32 512, 512
      %43 = vsyncadd [#allocation6], %s42
      %s44 = sshll.u32 [#allocation7], 4
      %s45 = int_to_ptr.vmem [resolvable:$true] %s44
      %50 = dma.hbm_to_vmem [thread:$0]  %s2, 512, %s45, [#allocation6], 128, 128, 8
    $region13: #{tpu_custom_call.1} parent=1 // pred_fallthru
      _
    // Predicated region
    $region14: #{tpu_custom_call.1} parent=1 // pred_check
      _
    $region15: #{tpu_custom_call.1} parent=1 // pred_check_branch
      %52 = sbr.rel (0) target = $region17
    $region16: #{tpu_custom_call.1} parent=1 // pred_region
      %s54 = ssub.s32 512, 512
      %55 = vsyncadd [#allocation9], %s54
      %s56 = sshll.u32 [#allocation8], 4
      %s57 = int_to_ptr.vmem [resolvable:$true] %s56
      %62 = dma.hbm_to_vmem [thread:$0]  %s3, 512, %s57, [#allocation9], 128, 128, 8
    $region17: #{tpu_custom_call.1} parent=1 // pred_fallthru
      _
    // Predicated region
    $region18: #{tpu_custom_call.1} parent=1 // pred_check
      _
    $region19: #{tpu_custom_call.1} parent=1 // pred_check_branch
      %64 = sbr.rel (0) target = $region21
    $region20: #{tpu_custom_call.1} parent=1 // pred_region
      _
    $region21: #{tpu_custom_call.1} parent=1 // pred_fallthru
      _
    // Predicated region
    $region22: #{tpu_custom_call.1} parent=1 // pred_check
      _
    $region23: #{tpu_custom_call.1} parent=1 // pred_check_branch
      %66 = sbr.rel (0) target = $region25
    $region24: #{tpu_custom_call.1} parent=1 // pred_region
      %s68 = ssub.s32 512, 512
      %69 = vsyncadd [#allocation9], %s68
      %s70 = sshll.u32 [#allocation10], 4
      %s71 = int_to_ptr.vmem [resolvable:$true] %s70
      %76 = dma.hbm_to_vmem [thread:$0]  %s5, 512, %s71, [#allocation9], 128, 128, 8
    $region25: #{tpu_custom_call.1} parent=1 // pred_fallthru
      _
    // Predicated region
    $region26: #{tpu_custom_call.1} parent=1 // pred_check
      _
    $region27: #{tpu_custom_call.1} parent=1 // pred_check_branch
      %78 = sbr.rel (0) target = $region29
    $region28: #{tpu_custom_call.1} parent=1 // pred_region
      %79 = dma.done [#allocation3], 1024
    $region29: #{tpu_custom_call.1} parent=1 // pred_fallthru
      _
    // Predicated region
    $region30: #{tpu_custom_call.1} parent=1 // pred_check
      _
    $region31: #{tpu_custom_call.1} parent=1 // pred_check_branch
      %81 = sbr.rel (0) target = $region33
    $region32: #{tpu_custom_call.1} parent=1 // pred_region
      %82 = dma.done [#allocation6], 1024
    $region33: #{tpu_custom_call.1} parent=1 // pred_fallthru
      _
    // Predicated region
    $region34: #{tpu_custom_call.1} parent=1 // pred_check
      _
    $region35: #{tpu_custom_call.1} parent=1 // pred_check_branch
      %84 = sbr.rel (0) target = $region37
    $region36: #{tpu_custom_call.1} parent=1 // pred_region
      %85 = dma.done [#allocation6], 512
    $region37: #{tpu_custom_call.1} parent=1 // pred_fallthru
      _
    // Predicated region
    $region38: #{tpu_custom_call.1} parent=1 // pred_check
      _
    $region39: #{tpu_custom_call.1} parent=1 // pred_check_branch
      %87 = sbr.rel (0) target = $region41
    $region40: #{tpu_custom_call.1} parent=1 // pred_region
      %88 = dma.done [#allocation9], 512
    $region41: #{tpu_custom_call.1} parent=1 // pred_fallthru
      _
    // Predicated region
    $region42: #{tpu_custom_call.1} parent=1 // pred_check
      _
    $region43: #{tpu_custom_call.1} parent=1 // pred_check_branch
      %90 = sbr.rel (0) target = $region45
    $region44: #{tpu_custom_call.1} parent=1 // pred_region
      %91 = dma.done [#allocation9], 512
    $region45: #{tpu_custom_call.1} parent=1 // pred_fallthru
      _
    %v92 = vld [vmem:[#allocation7] sm:$0xff]
    %v93 = vld [vmem:[#allocation7 + $0x8] sm:$0xff]
    %v94 = vld [vmem:[#allocation7 + $0x10] sm:$0xff]
    %v95 = vld [vmem:[#allocation7 + $0x18] sm:$0xff]
    %v96 = vld [vmem:[#allocation8] sm:$0xff]
    %v97 = vld [vmem:[#allocation8 + $0x8] sm:$0xff]
    %v98 = vld [vmem:[#allocation8 + $0x10] sm:$0xff]
    %v99 = vld [vmem:[#allocation8 + $0x18] sm:$0xff]
    %v100 = vld [vmem:[%s4] sm:$0x1]
    %v101 = vld [vmem:[#allocation2] sm:$0xff]
    %v102 = vld [vmem:[#allocation2 + $0x8] sm:$0xff]
    %v103 = vld [vmem:[#allocation2 + $0x10] sm:$0xff]
    %v104 = vld [vmem:[#allocation2 + $0x18] sm:$0xff]
    %v105 = vld [vmem:[#allocation2 + $0x20] sm:$0xff]
    %v106 = vld [vmem:[#allocation2 + $0x28] sm:$0xff]
    %v107 = vld [vmem:[#allocation2 + $0x30] sm:$0xff]
    %v108 = vld [vmem:[#allocation2 + $0x38] sm:$0xff]
    %v109 = vld [vmem:[#allocation5] sm:$0xff]
    %v110 = vld [vmem:[#allocation5 + $0x8] sm:$0xff]
    %v111 = vld [vmem:[#allocation5 + $0x10] sm:$0xff]
    %v112 = vld [vmem:[#allocation5 + $0x18] sm:$0xff]
    %v113 = vld [vmem:[#allocation5 + $0x20] sm:$0xff]
    %v114 = vld [vmem:[#allocation5 + $0x28] sm:$0xff]
    %v115 = vld [vmem:[#allocation5 + $0x30] sm:$0xff]
    %v116 = vld [vmem:[#allocation5 + $0x38] sm:$0xff]
    %v118 = vlaneseq
    %v119 = vshrl.u32 %v118, 7
    %v120 = vsub.s32 0, %v119
    %v121 = vrot.slane %v100, %v120
    %vm123 = vcmask 261120
    %v125 = vsel %vm123, %v101, 0
    %v128 = vsel %vm123, %v102, 0
    %v131 = vsel %vm123, %v103, 0
    %v134 = vsel %vm123, %v104, 0
    %v137 = vsel %vm123, %v105, 0
    %v140 = vsel %vm123, %v106, 0
    %v143 = vsel %vm123, %v107, 0
    %v146 = vsel %vm123, %v108, 0
    %v149 = vsel %vm123, %v109, 0
    %v152 = vsel %vm123, %v110, 0
    %v155 = vsel %vm123, %v111, 0
    %v158 = vsel %vm123, %v112, 0
    %v161 = vsel %vm123, %v113, 0
    %v164 = vsel %vm123, %v114, 0
    %v167 = vsel %vm123, %v115, 0
    %v170 = vsel %vm123, %v116, 0
    %172 = vmatprep.subr.mxu0 0.0
    %173 = vmatpush1.msra.mxu0 %v92
    %174 = vmatprep.subr.mxu0 0.0
    %175 = vmatpush1.msra.mxu0 %v93
    %176 = vmatprep.subr.mxu0 0.0
    %177 = vmatpush1.msra.mxu0 %v94
    %178 = vmatprep.subr.mxu0 0.0
    %179 = vmatpush1.msra.mxu0 %v95
    %180 = vmatprep.subr.mxu0 0.0
    %181 = vmatpush1.msra.mxu0 0.0
    %182 = vmatprep.subr.mxu0 0.0
    %183 = vmatpush1.msra.mxu0 0.0
    %184 = vmatprep.subr.mxu0 0.0
    %185 = vmatpush1.msra.mxu0 0.0
    %186 = vmatprep.subr.mxu0 0.0
    %187 = vmatpush1.msra.mxu0 0.0
    %188 = vmatprep.subr.mxu0 0.0
    %189 = vmatpush1.msra.mxu0 0.0
    %190 = vmatprep.subr.mxu0 0.0
    %191 = vmatpush1.msra.mxu0 0.0
    %192 = vmatprep.subr.mxu0 0.0
    %193 = vmatpush1.msra.mxu0 0.0
    %194 = vmatprep.subr.mxu0 0.0
    %195 = vmatpush1.msra.mxu0 0.0
    %196 = vmatprep.subr.mxu0 0.0
    %197 = vmatpush1.msra.mxu0 0.0
    %198 = vmatprep.subr.mxu0 0.0
    %199 = vmatpush1.msra.mxu0 0.0
    %200 = vmatprep.subr.mxu0 0.0
    %201 = vmatpush1.msra.mxu0 0.0
    %202 = vmatprep.subr.mxu0 0.0
    %203 = vmatpush1.msra.mxu0 0.0
    %204 = vmatprep.subr.mxu0 0.0
    %205 = vmatpush1.msra.mxu0 0.0
    %206 = vmatprep.subr.mxu0 0.0
    %207 = vmatpush1.msra.mxu0 0.0
    %208 = vmatprep.subr.mxu0 0.0
    %209 = vmatpush1.msra.mxu0 0.0
    %210 = vmatprep.subr.mxu0 0.0
    %211 = vmatpush1.msra.mxu0 0.0
    %212 = vmatprep.subr.mxu0 0.0
    %213 = vmatpush1.msra.mxu0 0.0
    %214 = vmatprep.subr.mxu0 0.0
    %215 = vmatpush1.msra.mxu0 0.0
    %216 = vmatprep.subr.mxu0 0.0
    %217 = vmatpush1.msra.mxu0 0.0
    %218 = vmatprep.subr.mxu0 0.0
    %219 = vmatpush1.msra.mxu0 0.0
    %220 = vmatprep.subr.mxu0 0.0
    %221 = vmatpush1.msra.mxu0 0.0
    %222 = vmatprep.subr.mxu0 0.0
    %223 = vmatpush1.msra.mxu0 0.0
    %224 = vmatprep.subr.mxu0 0.0
    %225 = vmatpush1.msra.mxu0 0.0
    %226 = vmatprep.subr.mxu0 0.0
    %227 = vmatpush1.msra.mxu0 0.0
    %228 = vmatprep.subr.mxu0 0.0
    %229 = vmatpush1.msra.mxu0 0.0
    %230 = vmatprep.subr.mxu0 0.0
    %231 = vmatpush1.msra.mxu0 0.0
    %232 = vmatprep.subr.mxu0 0.0
    %233 = vmatpush1.msra.mxu0 0.0
    %234 = vmatprep.subr.mxu0 0.0
    %235 = vmatpush1.msra.mxu0 0.0
    %236 = vmatprep.mubr.f32.mxu0 0.0
    %237 = vmatmul.mubr.f32.gmra.mrb[0].mxu0 %v125
    %v238 = vpop.f32.mrb[0].mxu0
    %v239 = vadd.f32 %v121, %v238
    %v240 = vpop.f32.mrb[0].mxu0
    %241 = vmatprep.mubr.f32.mxu0 0.0
    %242 = vmatmul.mubr.f32.gmra.mrb[0].mxu0 %v128
    %v243 = vpop.f32.mrb[0].mxu0
    %v244 = vadd.f32 %v121, %v243
    %v245 = vpop.f32.mrb[0].mxu0
    %246 = vmatprep.mubr.f32.mxu0 0.0
    %247 = vmatmul.mubr.f32.gmra.mrb[0].mxu0 %v131
    %v248 = vpop.f32.mrb[0].mxu0
    %v249 = vadd.f32 %v121, %v248
    %v250 = vpop.f32.mrb[0].mxu0
    %251 = vmatprep.mubr.f32.mxu0 0.0
    %252 = vmatmul.mubr.f32.gmra.mrb[0].mxu0 %v134
    %v253 = vpop.f32.mrb[0].mxu0
    %v254 = vadd.f32 %v121, %v253
    %v255 = vpop.f32.mrb[0].mxu0
    %256 = vmatprep.mubr.f32.mxu0 0.0
    %257 = vmatmul.mubr.f32.gmra.mrb[0].mxu0 %v137
    %v258 = vpop.f32.mrb[0].mxu0
    %v259 = vadd.f32 %v121, %v258
    %v260 = vpop.f32.mrb[0].mxu0
    %261 = vmatprep.mubr.f32.mxu0 0.0
    %262 = vmatmul.mubr.f32.gmra.mrb[0].mxu0 %v140
    %v263 = vpop.f32.mrb[0].mxu0
    %v264 = vadd.f32 %v121, %v263
    %v265 = vpop.f32.mrb[0].mxu0
    %266 = vmatprep.mubr.f32.mxu0 0.0
    %267 = vmatmul.mubr.f32.gmra.mrb[0].mxu0 %v143
    %v268 = vpop.f32.mrb[0].mxu0
    %v269 = vadd.f32 %v121, %v268
    %v270 = vpop.f32.mrb[0].mxu0
    %271 = vmatprep.mubr.f32.mxu0 0.0
    %272 = vmatmul.mubr.f32.gmra.mrb[0].mxu0 %v146
    %v273 = vpop.f32.mrb[0].mxu0
    %v274 = vadd.f32 %v121, %v273
    %v275 = vpop.f32.mrb[0].mxu0
    %276 = vmatprep.mubr.f32.mxu0 0.0
    %277 = vmatmul.mubr.f32.gmra.mrb[0].mxu0 %v149
    %v278 = vpop.f32.mrb[0].mxu0
    %v279 = vadd.f32 %v121, %v278
    %v280 = vpop.f32.mrb[0].mxu0
    %281 = vmatprep.mubr.f32.mxu0 0.0
    %282 = vmatmul.mubr.f32.gmra.mrb[0].mxu0 %v152
    %v283 = vpop.f32.mrb[0].mxu0
    %v284 = vadd.f32 %v121, %v283
    %v285 = vpop.f32.mrb[0].mxu0
    %286 = vmatprep.mubr.f32.mxu0 0.0
    %287 = vmatmul.mubr.f32.gmra.mrb[0].mxu0 %v155
    %v288 = vpop.f32.mrb[0].mxu0
    %v289 = vadd.f32 %v121, %v288
    %v290 = vpop.f32.mrb[0].mxu0
    %291 = vmatprep.mubr.f32.mxu0 0.0
    %292 = vmatmul.mubr.f32.gmra.mrb[0].mxu0 %v158
    %v293 = vpop.f32.mrb[0].mxu0
    %v294 = vadd.f32 %v121, %v293
    %v295 = vpop.f32.mrb[0].mxu0
    %296 = vmatprep.mubr.f32.mxu0 0.0
    %297 = vmatmul.mubr.f32.gmra.mrb[0].mxu0 %v161
    %v298 = vpop.f32.mrb[0].mxu0
    %v299 = vadd.f32 %v121, %v298
    %v300 = vpop.f32.mrb[0].mxu0
    %301 = vmatprep.mubr.f32.mxu0 0.0
    %302 = vmatmul.mubr.f32.gmra.mrb[0].mxu0 %v164
    %v303 = vpop.f32.mrb[0].mxu0
    %v304 = vadd.f32 %v121, %v303
    %v305 = vpop.f32.mrb[0].mxu0
    %306 = vmatprep.mubr.f32.mxu0 0.0
    %307 = vmatmul.mubr.f32.gmra.mrb[0].mxu0 %v167
    %v308 = vpop.f32.mrb[0].mxu0
    %v309 = vadd.f32 %v121, %v308
    %v310 = vpop.f32.mrb[0].mxu0
    %311 = vmatprep.mubr.f32.mxu0 0.0
    %312 = vmatmul.mubr.f32.gmra.mrb[0].mxu0 %v170
    %v313 = vpop.f32.mrb[0].mxu0
    %v314 = vadd.f32 %v121, %v313
    %v315 = vpop.f32.mrb[0].mxu0
    %316 = vdwg.mxu0
    %v317 = vtanh.pop %v239
    %v318 = vtanh.pop %v244
    %v319 = vtanh.pop %v249
    %v320 = vtanh.pop %v254
    %v321 = vtanh.pop %v259
    %v322 = vtanh.pop %v264
    %v323 = vtanh.pop %v269
    %v324 = vtanh.pop %v274
    %v325 = vtanh.pop %v279
    %v326 = vtanh.pop %v284
    %v327 = vtanh.pop %v289
    %v328 = vtanh.pop %v294
    %v329 = vtanh.pop %v299
    %v330 = vtanh.pop %v304
    %v331 = vtanh.pop %v309
    %v332 = vtanh.pop %v314
    %v349 = vrot.slane %v318, 7
    %vm350 = vcmask 1041409
    %v351 = vsel %vm350, %v349, %v317
    %v352 = vrot.slane %v319, 6
    %vm353 = vcmask 1042434
    %v354 = vsel %vm353, %v352, %v351
    %v355 = vrot.slane %v320, 5
    %vm356 = vcmask 1043459
    %v357 = vsel %vm356, %v355, %v354
    %v358 = vrot.slane %v321, 4
    %vm359 = vcmask 1044484
    %v360 = vsel %vm359, %v358, %v357
    %v361 = vrot.slane %v322, 3
    %vm362 = vcmask 1045509
    %v363 = vsel %vm362, %v361, %v360
    %v364 = vrot.slane %v323, 2
    %vm365 = vcmask 1046534
    %v366 = vsel %vm365, %v364, %v363
    %v367 = vrot.slane %v324, 1
    %vm368 = vcmask 1047559
    %v369 = vsel %vm368, %v367, %v366
    %v370 = vrot.slane %v326, 7
    %v371 = vsel %vm350, %v370, %v325
    %v372 = vrot.slane %v327, 6
    %v373 = vsel %vm353, %v372, %v371
    %v374 = vrot.slane %v328, 5
    %v375 = vsel %vm356, %v374, %v373
    %v376 = vrot.slane %v329, 4
    %v377 = vsel %vm359, %v376, %v375
    %v378 = vrot.slane %v330, 3
    %v379 = vsel %vm362, %v378, %v377
    %v380 = vrot.slane %v331, 2
    %v381 = vsel %vm365, %v380, %v379
    %v382 = vrot.slane %v332, 1
    %v383 = vsel %vm368, %v382, %v381
    %v384 = vsel %vm123, %v369, 0
    %v386 = vsel %vm123, %v383, 0
    %388 = vmatprep.subr.mxu0 0.0
    %389 = vmatpush1.msra.mxu0 %v96
    %390 = vmatprep.subr.mxu0 0.0
    %391 = vmatpush1.msra.mxu0 %v97
    %392 = vmatprep.subr.mxu0 0.0
    %393 = vmatpush1.msra.mxu0 %v98
    %394 = vmatprep.subr.mxu0 0.0
    %395 = vmatpush1.msra.mxu0 %v99
    %396 = vmatprep.subr.mxu0 0.0
    %397 = vmatpush1.msra.mxu0 0.0
    %398 = vmatprep.subr.mxu0 0.0
    %399 = vmatpush1.msra.mxu0 0.0
    %400 = vmatprep.subr.mxu0 0.0
    %401 = vmatpush1.msra.mxu0 0.0
    %402 = vmatprep.subr.mxu0 0.0
    %403 = vmatpush1.msra.mxu0 0.0
    %404 = vmatprep.subr.mxu0 0.0
    %405 = vmatpush1.msra.mxu0 0.0
    %406 = vmatprep.subr.mxu0 0.0
    %407 = vmatpush1.msra.mxu0 0.0
    %408 = vmatprep.subr.mxu0 0.0
    %409 = vmatpush1.msra.mxu0 0.0
    %410 = vmatprep.subr.mxu0 0.0
    %411 = vmatpush1.msra.mxu0 0.0
    %412 = vmatprep.subr.mxu0 0.0
    %413 = vmatpush1.msra.mxu0 0.0
    %414 = vmatprep.subr.mxu0 0.0
    %415 = vmatpush1.msra.mxu0 0.0
    %416 = vmatprep.subr.mxu0 0.0
    %417 = vmatpush1.msra.mxu0 0.0
    %418 = vmatprep.subr.mxu0 0.0
    %419 = vmatpush1.msra.mxu0 0.0
    %420 = vmatprep.subr.mxu0 0.0
    %421 = vmatpush1.msra.mxu0 0.0
    %422 = vmatprep.subr.mxu0 0.0
    %423 = vmatpush1.msra.mxu0 0.0
    %424 = vmatprep.subr.mxu0 0.0
    %425 = vmatpush1.msra.mxu0 0.0
    %426 = vmatprep.subr.mxu0 0.0
    %427 = vmatpush1.msra.mxu0 0.0
    %428 = vmatprep.subr.mxu0 0.0
    %429 = vmatpush1.msra.mxu0 0.0
    %430 = vmatprep.subr.mxu0 0.0
    %431 = vmatpush1.msra.mxu0 0.0
    %432 = vmatprep.subr.mxu0 0.0
    %433 = vmatpush1.msra.mxu0 0.0
    %434 = vmatprep.subr.mxu0 0.0
    %435 = vmatpush1.msra.mxu0 0.0
    %436 = vmatprep.subr.mxu0 0.0
    %437 = vmatpush1.msra.mxu0 0.0
    %438 = vmatprep.subr.mxu0 0.0
    %439 = vmatpush1.msra.mxu0 0.0
    %440 = vmatprep.subr.mxu0 0.0
    %441 = vmatpush1.msra.mxu0 0.0
    %442 = vmatprep.subr.mxu0 0.0
    %443 = vmatpush1.msra.mxu0 0.0
    %444 = vmatprep.subr.mxu0 0.0
    %445 = vmatpush1.msra.mxu0 0.0
    %446 = vmatprep.subr.mxu0 0.0
    %447 = vmatpush1.msra.mxu0 0.0
    %448 = vmatprep.subr.mxu0 0.0
    %449 = vmatpush1.msra.mxu0 0.0
    %450 = vmatprep.subr.mxu0 0.0
    %451 = vmatpush1.msra.mxu0 0.0
    %452 = vmatprep.mubr.f32.mxu0 0.0
    %453 = vmatmul.mubr.f32.gmra.mrb[0].mxu0 %v384
    %v454 = vpop.f32.mrb[0].mxu0
    %v455 = vadd.f32 0.0, %v454
    %v456 = vpop.f32.mrb[0].mxu0
    %457 = vmatprep.mubr.f32.mxu0 0.0
    %458 = vmatmul.mubr.f32.gmra.mrb[0].mxu0 %v386
    %v459 = vpop.f32.mrb[0].mxu0
    %v460 = vadd.f32 0.0, %v459
    %v461 = vpop.f32.mrb[0].mxu0
    %462 = vdwg.mxu0
    %v465 = vrot.slane %v455, 7
    %v466 = vrot.slane %v455, 1
    %v467 = vrot.slane %v455, 2
    %v468 = vrot.slane %v455, 3
    %v469 = vrot.slane %v455, 4
    %v470 = vrot.slane %v455, 5
    %v471 = vrot.slane %v455, 6
    %v472 = vrot.slane %v460, 7
    %v473 = vrot.slane %v460, 1
    %v474 = vrot.slane %v460, 2
    %v475 = vrot.slane %v460, 3
    %v476 = vrot.slane %v460, 4
    %v477 = vrot.slane %v460, 5
    %v478 = vrot.slane %v460, 6
    %v495 = vadd.f32 %v239, %v465
    %v496 = vadd.f32 %v244, %v455
    %v497 = vadd.f32 %v249, %v466
    %v498 = vadd.f32 %v254, %v467
    %v499 = vadd.f32 %v259, %v468
    %v500 = vadd.f32 %v264, %v469
    %v501 = vadd.f32 %v269, %v470
    %v502 = vadd.f32 %v274, %v471
    %v503 = vadd.f32 %v279, %v472
    %v504 = vadd.f32 %v284, %v460
    %v505 = vadd.f32 %v289, %v473
    %v506 = vadd.f32 %v294, %v474
    %v507 = vadd.f32 %v299, %v475
    %v508 = vadd.f32 %v304, %v476
    %v509 = vadd.f32 %v309, %v477
    %v510 = vadd.f32 %v314, %v478
    %v511 = vtanh.pop %v495
    %v512 = vtanh.pop %v496
    %v513 = vtanh.pop %v497
    %v514 = vtanh.pop %v498
    %v515 = vtanh.pop %v499
    %v516 = vtanh.pop %v500
    %v517 = vtanh.pop %v501
    %v518 = vtanh.pop %v502
    %v519 = vtanh.pop %v503
    %v520 = vtanh.pop %v504
    %v521 = vtanh.pop %v505
    %v522 = vtanh.pop %v506
    %v523 = vtanh.pop %v507
    %v524 = vtanh.pop %v508
    %v525 = vtanh.pop %v509
    %v526 = vtanh.pop %v510
    %v543 = vrot.slane %v511, 1
    %v544 = vsel %vm350, %v512, %v543
    %v545 = vrot.slane %v513, 7
    %v546 = vsel %vm353, %v545, %v544
    %v547 = vrot.slane %v514, 6
    %v548 = vsel %vm356, %v547, %v546
    %v549 = vrot.slane %v515, 5
    %v550 = vsel %vm359, %v549, %v548
    %v551 = vrot.slane %v516, 4
    %v552 = vsel %vm362, %v551, %v550
    %v553 = vrot.slane %v517, 3
    %v554 = vsel %vm365, %v553, %v552
    %v555 = vrot.slane %v518, 2
    %v556 = vsel %vm368, %v555, %v554
    %v557 = vrot.slane %v519, 1
    %v558 = vsel %vm350, %v520, %v557
    %v559 = vrot.slane %v521, 7
    %v560 = vsel %vm353, %v559, %v558
    %v561 = vrot.slane %v522, 6
    %v562 = vsel %vm356, %v561, %v560
    %v563 = vrot.slane %v523, 5
    %v564 = vsel %vm359, %v563, %v562
    %v565 = vrot.slane %v524, 4
    %v566 = vsel %vm362, %v565, %v564
    %v567 = vrot.slane %v525, 3
    %v568 = vsel %vm365, %v567, %v566
    %v569 = vrot.slane %v526, 2
    %v570 = vsel %vm368, %v569, %v568
    %v571 = vsel %vm123, %v556, 0
    %v573 = vsel %vm123, %v570, 0
    %575 = vmatprep.subr.mxu0 0.0
    %576 = vmatpush1.msra.mxu0 %v96
    %577 = vmatprep.subr.mxu0 0.0
    %578 = vmatpush1.msra.mxu0 %v97
    %579 = vmatprep.subr.mxu0 0.0
    %580 = vmatpush1.msra.mxu0 %v98
    %581 = vmatprep.subr.mxu0 0.0
    %582 = vmatpush1.msra.mxu0 %v99
    %583 = vmatprep.subr.mxu0 0.0
    %584 = vmatpush1.msra.mxu0 0.0
    %585 = vmatprep.subr.mxu0 0.0
    %586 = vmatpush1.msra.mxu0 0.0
    %587 = vmatprep.subr.mxu0 0.0
    %588 = vmatpush1.msra.mxu0 0.0
    %589 = vmatprep.subr.mxu0 0.0
    %590 = vmatpush1.msra.mxu0 0.0
    %591 = vmatprep.subr.mxu0 0.0
    %592 = vmatpush1.msra.mxu0 0.0
    %593 = vmatprep.subr.mxu0 0.0
    %594 = vmatpush1.msra.mxu0 0.0
    %595 = vmatprep.subr.mxu0 0.0
    %596 = vmatpush1.msra.mxu0 0.0
    %597 = vmatprep.subr.mxu0 0.0
    %598 = vmatpush1.msra.mxu0 0.0
    %599 = vmatprep.subr.mxu0 0.0
    %600 = vmatpush1.msra.mxu0 0.0
    %601 = vmatprep.subr.mxu0 0.0
    %602 = vmatpush1.msra.mxu0 0.0
    %603 = vmatprep.subr.mxu0 0.0
    %604 = vmatpush1.msra.mxu0 0.0
    %605 = vmatprep.subr.mxu0 0.0
    %606 = vmatpush1.msra.mxu0 0.0
    %607 = vmatprep.subr.mxu0 0.0
    %608 = vmatpush1.msra.mxu0 0.0
    %609 = vmatprep.subr.mxu0 0.0
    %610 = vmatpush1.msra.mxu0 0.0
    %611 = vmatprep.subr.mxu0 0.0
    %612 = vmatpush1.msra.mxu0 0.0
    %613 = vmatprep.subr.mxu0 0.0
    %614 = vmatpush1.msra.mxu0 0.0
    %615 = vmatprep.subr.mxu0 0.0
    %616 = vmatpush1.msra.mxu0 0.0
    %617 = vmatprep.subr.mxu0 0.0
    %618 = vmatpush1.msra.mxu0 0.0
    %619 = vmatprep.subr.mxu0 0.0
    %620 = vmatpush1.msra.mxu0 0.0
    %621 = vmatprep.subr.mxu0 0.0
    %622 = vmatpush1.msra.mxu0 0.0
    %623 = vmatprep.subr.mxu0 0.0
    %624 = vmatpush1.msra.mxu0 0.0
    %625 = vmatprep.subr.mxu0 0.0
    %626 = vmatpush1.msra.mxu0 0.0
    %627 = vmatprep.subr.mxu0 0.0
    %628 = vmatpush1.msra.mxu0 0.0
    %629 = vmatprep.subr.mxu0 0.0
    %630 = vmatpush1.msra.mxu0 0.0
    %631 = vmatprep.subr.mxu0 0.0
    %632 = vmatpush1.msra.mxu0 0.0
    %633 = vmatprep.subr.mxu0 0.0
    %634 = vmatpush1.msra.mxu0 0.0
    %635 = vmatprep.subr.mxu0 0.0
    %636 = vmatpush1.msra.mxu0 0.0
    %637 = vmatprep.subr.mxu0 0.0
    %638 = vmatpush1.msra.mxu0 0.0
    %639 = vmatprep.mubr.f32.mxu0 0.0
    %640 = vmatmul.mubr.f32.gmra.mrb[0].mxu0 %v571
    %v641 = vpop.f32.mrb[0].mxu0
    %v642 = vadd.f32 0.0, %v641
    %v643 = vpop.f32.mrb[0].mxu0
    %644 = vmatprep.mubr.f32.mxu0 0.0
    %645 = vmatmul.mubr.f32.gmra.mrb[0].mxu0 %v573
    %v646 = vpop.f32.mrb[0].mxu0
    %v647 = vadd.f32 0.0, %v646
    %v648 = vpop.f32.mrb[0].mxu0
    %649 = vdwg.mxu0
    %v652 = vrot.slane %v642, 6
    %v653 = vrot.slane %v642, 7
    %v654 = vrot.slane %v642, 1
    %v655 = vrot.slane %v642, 2
    %v656 = vrot.slane %v642, 3
    %v657 = vrot.slane %v642, 4
    %v658 = vrot.slane %v642, 5
    %v659 = vrot.slane %v647, 6
    %v660 = vrot.slane %v647, 7
    %v661 = vrot.slane %v647, 1
    %v662 = vrot.slane %v647, 2
    %v663 = vrot.slane %v647, 3
    %v664 = vrot.slane %v647, 4
    %v665 = vrot.slane %v647, 5
    %v682 = vadd.f32 %v239, %v652
    %v683 = vadd.f32 %v244, %v653
    %v684 = vadd.f32 %v249, %v642
    %v685 = vadd.f32 %v254, %v654
    %v686 = vadd.f32 %v259, %v655
    %v687 = vadd.f32 %v264, %v656
    %v688 = vadd.f32 %v269, %v657
    %v689 = vadd.f32 %v274, %v658
    %v690 = vadd.f32 %v279, %v659
    %v691 = vadd.f32 %v284, %v660
    %v692 = vadd.f32 %v289, %v647
    %v693 = vadd.f32 %v294, %v661
    %v694 = vadd.f32 %v299, %v662
    %v695 = vadd.f32 %v304, %v663
    %v696 = vadd.f32 %v309, %v664
    %v697 = vadd.f32 %v314, %v665
    %v698 = vtanh.pop %v682
    %v699 = vtanh.pop %v683
    %v700 = vtanh.pop %v684
    %v701 = vtanh.pop %v685
    %v702 = vtanh.pop %v686
    %v703 = vtanh.pop %v687
    %v704 = vtanh.pop %v688
    %v705 = vtanh.pop %v689
    %v706 = vtanh.pop %v690
    %v707 = vtanh.pop %v691
    %v708 = vtanh.pop %v692
    %v709 = vtanh.pop %v693
    %v710 = vtanh.pop %v694
    %v711 = vtanh.pop %v695
    %v712 = vtanh.pop %v696
    %v713 = vtanh.pop %v697
    %v730 = vrot.slane %v698, 2
    %v731 = vrot.slane %v699, 1
    %v732 = vsel %vm350, %v731, %v730
    %v733 = vsel %vm353, %v700, %v732
    %v734 = vrot.slane %v701, 7
    %v735 = vsel %vm356, %v734, %v733
    %v736 = vrot.slane %v702, 6
    %v737 = vsel %vm359, %v736, %v735
    %v738 = vrot.slane %v703, 5
    %v739 = vsel %vm362, %v738, %v737
    %v740 = vrot.slane %v704, 4
    %v741 = vsel %vm365, %v740, %v739
    %v742 = vrot.slane %v705, 3
    %v743 = vsel %vm368, %v742, %v741
    %v744 = vrot.slane %v706, 2
    %v745 = vrot.slane %v707, 1
    %v746 = vsel %vm350, %v745, %v744
    %v747 = vsel %vm353, %v708, %v746
    %v748 = vrot.slane %v709, 7
    %v749 = vsel %vm356, %v748, %v747
    %v750 = vrot.slane %v710, 6
    %v751 = vsel %vm359, %v750, %v749
    %v752 = vrot.slane %v711, 5
    %v753 = vsel %vm362, %v752, %v751
    %v754 = vrot.slane %v712, 4
    %v755 = vsel %vm365, %v754, %v753
    %v756 = vrot.slane %v713, 3
    %v757 = vsel %vm368, %v756, %v755
    %v758 = vsel %vm123, %v743, 0
    %v760 = vsel %vm123, %v757, 0
    %762 = vmatprep.subr.mxu0 0.0
    %763 = vmatpush1.msra.mxu0 %v96
    %764 = vmatprep.subr.mxu0 0.0
    %765 = vmatpush1.msra.mxu0 %v97
    %766 = vmatprep.subr.mxu0 0.0
    %767 = vmatpush1.msra.mxu0 %v98
    %768 = vmatprep.subr.mxu0 0.0
    %769 = vmatpush1.msra.mxu0 %v99
    %770 = vmatprep.subr.mxu0 0.0
    %771 = vmatpush1.msra.mxu0 0.0
    %772 = vmatprep.subr.mxu0 0.0
    %773 = vmatpush1.msra.mxu0 0.0
    %774 = vmatprep.subr.mxu0 0.0
    %775 = vmatpush1.msra.mxu0 0.0
    %776 = vmatprep.subr.mxu0 0.0
    %777 = vmatpush1.msra.mxu0 0.0
    %778 = vmatprep.subr.mxu0 0.0
    %779 = vmatpush1.msra.mxu0 0.0
    %780 = vmatprep.subr.mxu0 0.0
    %781 = vmatpush1.msra.mxu0 0.0
    %782 = vmatprep.subr.mxu0 0.0
    %783 = vmatpush1.msra.mxu0 0.0
    %784 = vmatprep.subr.mxu0 0.0
    %785 = vmatpush1.msra.mxu0 0.0
    %786 = vmatprep.subr.mxu0 0.0
    %787 = vmatpush1.msra.mxu0 0.0
    %788 = vmatprep.subr.mxu0 0.0
    %789 = vmatpush1.msra.mxu0 0.0
    %790 = vmatprep.subr.mxu0 0.0
    %791 = vmatpush1.msra.mxu0 0.0
    %792 = vmatprep.subr.mxu0 0.0
    %793 = vmatpush1.msra.mxu0 0.0
    %794 = vmatprep.subr.mxu0 0.0
    %795 = vmatpush1.msra.mxu0 0.0
    %796 = vmatprep.subr.mxu0 0.0
    %797 = vmatpush1.msra.mxu0 0.0
    %798 = vmatprep.subr.mxu0 0.0
    %799 = vmatpush1.msra.mxu0 0.0
    %800 = vmatprep.subr.mxu0 0.0
    %801 = vmatpush1.msra.mxu0 0.0
    %802 = vmatprep.subr.mxu0 0.0
    %803 = vmatpush1.msra.mxu0 0.0
    %804 = vmatprep.subr.mxu0 0.0
    %805 = vmatpush1.msra.mxu0 0.0
    %806 = vmatprep.subr.mxu0 0.0
    %807 = vmatpush1.msra.mxu0 0.0
    %808 = vmatprep.subr.mxu0 0.0
    %809 = vmatpush1.msra.mxu0 0.0
    %810 = vmatprep.subr.mxu0 0.0
    %811 = vmatpush1.msra.mxu0 0.0
    %812 = vmatprep.subr.mxu0 0.0
    %813 = vmatpush1.msra.mxu0 0.0
    %814 = vmatprep.subr.mxu0 0.0
    %815 = vmatpush1.msra.mxu0 0.0
    %816 = vmatprep.subr.mxu0 0.0
    %817 = vmatpush1.msra.mxu0 0.0
    %818 = vmatprep.subr.mxu0 0.0
    %819 = vmatpush1.msra.mxu0 0.0
    %820 = vmatprep.subr.mxu0 0.0
    %821 = vmatpush1.msra.mxu0 0.0
    %822 = vmatprep.subr.mxu0 0.0
    %823 = vmatpush1.msra.mxu0 0.0
    %824 = vmatprep.subr.mxu0 0.0
    %825 = vmatpush1.msra.mxu0 0.0
    %826 = vmatprep.mubr.f32.mxu0 0.0
    %827 = vmatmul.mubr.f32.gmra.mrb[0].mxu0 %v758
    %v828 = vpop.f32.mrb[0].mxu0
    %v829 = vadd.f32 0.0, %v828
    %v830 = vpop.f32.mrb[0].mxu0
    %831 = vmatprep.mubr.f32.mxu0 0.0
    %832 = vmatmul.mubr.f32.gmra.mrb[0].mxu0 %v760
    %v833 = vpop.f32.mrb[0].mxu0
    %v834 = vadd.f32 0.0, %v833
    %v835 = vpop.f32.mrb[0].mxu0
    %836 = vdwg.mxu0
    %v839 = vrot.slane %v829, 5
    %v840 = vrot.slane %v829, 6
    %v841 = vrot.slane %v829, 7
    %v842 = vrot.slane %v829, 1
    %v843 = vrot.slane %v829, 2
    %v844 = vrot.slane %v829, 3
    %v845 = vrot.slane %v829, 4
    %v846 = vrot.slane %v834, 5
    %v847 = vrot.slane %v834, 6
    %v848 = vrot.slane %v834, 7
    %v849 = vrot.slane %v834, 1
    %v850 = vrot.slane %v834, 2
    %v851 = vrot.slane %v834, 3
    %v852 = vrot.slane %v834, 4
    %v869 = vadd.f32 %v239, %v839
    %v870 = vadd.f32 %v244, %v840
    %v871 = vadd.f32 %v249, %v841
    %v872 = vadd.f32 %v254, %v829
    %v873 = vadd.f32 %v259, %v842
    %v874 = vadd.f32 %v264, %v843
    %v875 = vadd.f32 %v269, %v844
    %v876 = vadd.f32 %v274, %v845
    %v877 = vadd.f32 %v279, %v846
    %v878 = vadd.f32 %v284, %v847
    %v879 = vadd.f32 %v289, %v848
    %v880 = vadd.f32 %v294, %v834
    %v881 = vadd.f32 %v299, %v849
    %v882 = vadd.f32 %v304, %v850
    %v883 = vadd.f32 %v309, %v851
    %v884 = vadd.f32 %v314, %v852
    %v885 = vtanh.pop %v869
    %v886 = vtanh.pop %v870
    %v887 = vtanh.pop %v871
    %v888 = vtanh.pop %v872
    %v889 = vtanh.pop %v873
    %v890 = vtanh.pop %v874
    %v891 = vtanh.pop %v875
    %v892 = vtanh.pop %v876
    %v893 = vtanh.pop %v877
    %v894 = vtanh.pop %v878
    %v895 = vtanh.pop %v879
    %v896 = vtanh.pop %v880
    %v897 = vtanh.pop %v881
    %v898 = vtanh.pop %v882
    %v899 = vtanh.pop %v883
    %v900 = vtanh.pop %v884
    %v917 = vrot.slane %v885, 3
    %v918 = vrot.slane %v886, 2
    %v919 = vsel %vm350, %v918, %v917
    %v920 = vrot.slane %v887, 1
    %v921 = vsel %vm353, %v920, %v919
    %v922 = vsel %vm356, %v888, %v921
    %v923 = vrot.slane %v889, 7
    %v924 = vsel %vm359, %v923, %v922
    %v925 = vrot.slane %v890, 6
    %v926 = vsel %vm362, %v925, %v924
    %v927 = vrot.slane %v891, 5
    %v928 = vsel %vm365, %v927, %v926
    %v929 = vrot.slane %v892, 4
    %v930 = vsel %vm368, %v929, %v928
    %v931 = vrot.slane %v893, 3
    %v932 = vrot.slane %v894, 2
    %v933 = vsel %vm350, %v932, %v931
    %v934 = vrot.slane %v895, 1
    %v935 = vsel %vm353, %v934, %v933
    %v936 = vsel %vm356, %v896, %v935
    %v937 = vrot.slane %v897, 7
    %v938 = vsel %vm359, %v937, %v936
    %v939 = vrot.slane %v898, 6
    %v940 = vsel %vm362, %v939, %v938
    %v941 = vrot.slane %v899, 5
    %v942 = vsel %vm365, %v941, %v940
    %v943 = vrot.slane %v900, 4
    %v944 = vsel %vm368, %v943, %v942
    %v945 = vsel %vm123, %v930, 0
    %v947 = vsel %vm123, %v944, 0
    %949 = vmatprep.subr.mxu0 0.0
    %950 = vmatpush1.msra.mxu0 %v96
    %951 = vmatprep.subr.mxu0 0.0
    %952 = vmatpush1.msra.mxu0 %v97
    %953 = vmatprep.subr.mxu0 0.0
    %954 = vmatpush1.msra.mxu0 %v98
    %955 = vmatprep.subr.mxu0 0.0
    %956 = vmatpush1.msra.mxu0 %v99
    %957 = vmatprep.subr.mxu0 0.0
    %958 = vmatpush1.msra.mxu0 0.0
    %959 = vmatprep.subr.mxu0 0.0
    %960 = vmatpush1.msra.mxu0 0.0
    %961 = vmatprep.subr.mxu0 0.0
    %962 = vmatpush1.msra.mxu0 0.0
    %963 = vmatprep.subr.mxu0 0.0
    %964 = vmatpush1.msra.mxu0 0.0
    %965 = vmatprep.subr.mxu0 0.0
    %966 = vmatpush1.msra.mxu0 0.0
    %967 = vmatprep.subr.mxu0 0.0
    %968 = vmatpush1.msra.mxu0 0.0
    %969 = vmatprep.subr.mxu0 0.0
    %970 = vmatpush1.msra.mxu0 0.0
    %971 = vmatprep.subr.mxu0 0.0
    %972 = vmatpush1.msra.mxu0 0.0
    %973 = vmatprep.subr.mxu0 0.0
    %974 = vmatpush1.msra.mxu0 0.0
    %975 = vmatprep.subr.mxu0 0.0
    %976 = vmatpush1.msra.mxu0 0.0
    %977 = vmatprep.subr.mxu0 0.0
    %978 = vmatpush1.msra.mxu0 0.0
    %979 = vmatprep.subr.mxu0 0.0
    %980 = vmatpush1.msra.mxu0 0.0
    %981 = vmatprep.subr.mxu0 0.0
    %982 = vmatpush1.msra.mxu0 0.0
    %983 = vmatprep.subr.mxu0 0.0
    %984 = vmatpush1.msra.mxu0 0.0
    %985 = vmatprep.subr.mxu0 0.0
    %986 = vmatpush1.msra.mxu0 0.0
    %987 = vmatprep.subr.mxu0 0.0
    %988 = vmatpush1.msra.mxu0 0.0
    %989 = vmatprep.subr.mxu0 0.0
    %990 = vmatpush1.msra.mxu0 0.0
    %991 = vmatprep.subr.mxu0 0.0
    %992 = vmatpush1.msra.mxu0 0.0
    %993 = vmatprep.subr.mxu0 0.0
    %994 = vmatpush1.msra.mxu0 0.0
    %995 = vmatprep.subr.mxu0 0.0
    %996 = vmatpush1.msra.mxu0 0.0
    %997 = vmatprep.subr.mxu0 0.0
    %998 = vmatpush1.msra.mxu0 0.0
    %999 = vmatprep.subr.mxu0 0.0
    %1000 = vmatpush1.msra.mxu0 0.0
    %1001 = vmatprep.subr.mxu0 0.0
    %1002 = vmatpush1.msra.mxu0 0.0
    %1003 = vmatprep.subr.mxu0 0.0
    %1004 = vmatpush1.msra.mxu0 0.0
    %1005 = vmatprep.subr.mxu0 0.0
    %1006 = vmatpush1.msra.mxu0 0.0
    %1007 = vmatprep.subr.mxu0 0.0
    %1008 = vmatpush1.msra.mxu0 0.0
    %1009 = vmatprep.subr.mxu0 0.0
    %1010 = vmatpush1.msra.mxu0 0.0
    %1011 = vmatprep.subr.mxu0 0.0
    %1012 = vmatpush1.msra.mxu0 0.0
    %1013 = vmatprep.mubr.f32.mxu0 0.0
    %1014 = vmatmul.mubr.f32.gmra.mrb[0].mxu0 %v945
    %v1015 = vpop.f32.mrb[0].mxu0
    %v1016 = vadd.f32 0.0, %v1015
    %v1017 = vpop.f32.mrb[0].mxu0
    %1018 = vmatprep.mubr.f32.mxu0 0.0
    %1019 = vmatmul.mubr.f32.gmra.mrb[0].mxu0 %v947
    %v1020 = vpop.f32.mrb[0].mxu0
    %v1021 = vadd.f32 0.0, %v1020
    %v1022 = vpop.f32.mrb[0].mxu0
    %1023 = vdwg.mxu0
    %v1026 = vrot.slane %v1016, 4
    %v1027 = vrot.slane %v1016, 5
    %v1028 = vrot.slane %v1016, 6
    %v1029 = vrot.slane %v1016, 7
    %v1030 = vrot.slane %v1016, 1
    %v1031 = vrot.slane %v1016, 2
    %v1032 = vrot.slane %v1016, 3
    %v1033 = vrot.slane %v1021, 4
    %v1034 = vrot.slane %v1021, 5
    %v1035 = vrot.slane %v1021, 6
    %v1036 = vrot.slane %v1021, 7
    %v1037 = vrot.slane %v1021, 1
    %v1038 = vrot.slane %v1021, 2
    %v1039 = vrot.slane %v1021, 3
    %v1056 = vadd.f32 %v239, %v1026
    %v1057 = vadd.f32 %v244, %v1027
    %v1058 = vadd.f32 %v249, %v1028
    %v1059 = vadd.f32 %v254, %v1029
    %v1060 = vadd.f32 %v259, %v1016
    %v1061 = vadd.f32 %v264, %v1030
    %v1062 = vadd.f32 %v269, %v1031
    %v1063 = vadd.f32 %v274, %v1032
    %v1064 = vadd.f32 %v279, %v1033
    %v1065 = vadd.f32 %v284, %v1034
    %v1066 = vadd.f32 %v289, %v1035
    %v1067 = vadd.f32 %v294, %v1036
    %v1068 = vadd.f32 %v299, %v1021
    %v1069 = vadd.f32 %v304, %v1037
    %v1070 = vadd.f32 %v309, %v1038
    %v1071 = vadd.f32 %v314, %v1039
    %v1072 = vtanh.pop %v1056
    %v1073 = vtanh.pop %v1057
    %v1074 = vtanh.pop %v1058
    %v1075 = vtanh.pop %v1059
    %v1076 = vtanh.pop %v1060
    %v1077 = vtanh.pop %v1061
    %v1078 = vtanh.pop %v1062
    %v1079 = vtanh.pop %v1063
    %v1080 = vtanh.pop %v1064
    %v1081 = vtanh.pop %v1065
    %v1082 = vtanh.pop %v1066
    %v1083 = vtanh.pop %v1067
    %v1084 = vtanh.pop %v1068
    %v1085 = vtanh.pop %v1069
    %v1086 = vtanh.pop %v1070
    %v1087 = vtanh.pop %v1071
    %v1104 = vrot.slane %v1072, 4
    %v1105 = vrot.slane %v1073, 3
    %v1106 = vsel %vm350, %v1105, %v1104
    %v1107 = vrot.slane %v1074, 2
    %v1108 = vsel %vm353, %v1107, %v1106
    %v1109 = vrot.slane %v1075, 1
    %v1110 = vsel %vm356, %v1109, %v1108
    %v1111 = vsel %vm359, %v1076, %v1110
    %v1112 = vrot.slane %v1077, 7
    %v1113 = vsel %vm362, %v1112, %v1111
    %v1114 = vrot.slane %v1078, 6
    %v1115 = vsel %vm365, %v1114, %v1113
    %v1116 = vrot.slane %v1079, 5
    %v1117 = vsel %vm368, %v1116, %v1115
    %v1118 = vrot.slane %v1080, 4
    %v1119 = vrot.slane %v1081, 3
    %v1120 = vsel %vm350, %v1119, %v1118
    %v1121 = vrot.slane %v1082, 2
    %v1122 = vsel %vm353, %v1121, %v1120
    %v1123 = vrot.slane %v1083, 1
    %v1124 = vsel %vm356, %v1123, %v1122
    %v1125 = vsel %vm359, %v1084, %v1124
    %v1126 = vrot.slane %v1085, 7
    %v1127 = vsel %vm362, %v1126, %v1125
    %v1128 = vrot.slane %v1086, 6
    %v1129 = vsel %vm365, %v1128, %v1127
    %v1130 = vrot.slane %v1087, 5
    %v1131 = vsel %vm368, %v1130, %v1129
    %v1132 = vsel %vm123, %v1117, 0
    %v1134 = vsel %vm123, %v1131, 0
    %1136 = vmatprep.subr.mxu0 0.0
    %1137 = vmatpush1.msra.mxu0 %v96
    %1138 = vmatprep.subr.mxu0 0.0
    %1139 = vmatpush1.msra.mxu0 %v97
    %1140 = vmatprep.subr.mxu0 0.0
    %1141 = vmatpush1.msra.mxu0 %v98
    %1142 = vmatprep.subr.mxu0 0.0
    %1143 = vmatpush1.msra.mxu0 %v99
    %1144 = vmatprep.subr.mxu0 0.0
    %1145 = vmatpush1.msra.mxu0 0.0
    %1146 = vmatprep.subr.mxu0 0.0
    %1147 = vmatpush1.msra.mxu0 0.0
    %1148 = vmatprep.subr.mxu0 0.0
    %1149 = vmatpush1.msra.mxu0 0.0
    %1150 = vmatprep.subr.mxu0 0.0
    %1151 = vmatpush1.msra.mxu0 0.0
    %1152 = vmatprep.subr.mxu0 0.0
    %1153 = vmatpush1.msra.mxu0 0.0
    %1154 = vmatprep.subr.mxu0 0.0
    %1155 = vmatpush1.msra.mxu0 0.0
    %1156 = vmatprep.subr.mxu0 0.0
    %1157 = vmatpush1.msra.mxu0 0.0
    %1158 = vmatprep.subr.mxu0 0.0
    %1159 = vmatpush1.msra.mxu0 0.0
    %1160 = vmatprep.subr.mxu0 0.0
    %1161 = vmatpush1.msra.mxu0 0.0
    %1162 = vmatprep.subr.mxu0 0.0
    %1163 = vmatpush1.msra.mxu0 0.0
    %1164 = vmatprep.subr.mxu0 0.0
    %1165 = vmatpush1.msra.mxu0 0.0
    %1166 = vmatprep.subr.mxu0 0.0
    %1167 = vmatpush1.msra.mxu0 0.0
    %1168 = vmatprep.subr.mxu0 0.0
    %1169 = vmatpush1.msra.mxu0 0.0
    %1170 = vmatprep.subr.mxu0 0.0
    %1171 = vmatpush1.msra.mxu0 0.0
    %1172 = vmatprep.subr.mxu0 0.0
    %1173 = vmatpush1.msra.mxu0 0.0
    %1174 = vmatprep.subr.mxu0 0.0
    %1175 = vmatpush1.msra.mxu0 0.0
    %1176 = vmatprep.subr.mxu0 0.0
    %1177 = vmatpush1.msra.mxu0 0.0
    %1178 = vmatprep.subr.mxu0 0.0
    %1179 = vmatpush1.msra.mxu0 0.0
    %1180 = vmatprep.subr.mxu0 0.0
    %1181 = vmatpush1.msra.mxu0 0.0
    %1182 = vmatprep.subr.mxu0 0.0
    %1183 = vmatpush1.msra.mxu0 0.0
    %1184 = vmatprep.subr.mxu0 0.0
    %1185 = vmatpush1.msra.mxu0 0.0
    %1186 = vmatprep.subr.mxu0 0.0
    %1187 = vmatpush1.msra.mxu0 0.0
    %1188 = vmatprep.subr.mxu0 0.0
    %1189 = vmatpush1.msra.mxu0 0.0
    %1190 = vmatprep.subr.mxu0 0.0
    %1191 = vmatpush1.msra.mxu0 0.0
    %1192 = vmatprep.subr.mxu0 0.0
    %1193 = vmatpush1.msra.mxu0 0.0
    %1194 = vmatprep.subr.mxu0 0.0
    %1195 = vmatpush1.msra.mxu0 0.0
    %1196 = vmatprep.subr.mxu0 0.0
    %1197 = vmatpush1.msra.mxu0 0.0
    %1198 = vmatprep.subr.mxu0 0.0
    %1199 = vmatpush1.msra.mxu0 0.0
    %1200 = vmatprep.mubr.f32.mxu0 0.0
    %1201 = vmatmul.mubr.f32.gmra.mrb[0].mxu0 %v1132
    %v1202 = vpop.f32.mrb[0].mxu0
    %v1203 = vadd.f32 0.0, %v1202
    %v1204 = vpop.f32.mrb[0].mxu0
    %1205 = vmatprep.mubr.f32.mxu0 0.0
    %1206 = vmatmul.mubr.f32.gmra.mrb[0].mxu0 %v1134
    %v1207 = vpop.f32.mrb[0].mxu0
    %v1208 = vadd.f32 0.0, %v1207
    %v1209 = vpop.f32.mrb[0].mxu0
    %1210 = vdwg.mxu0
    %v1213 = vrot.slane %v1203, 3
    %v1214 = vrot.slane %v1203, 4
    %v1215 = vrot.slane %v1203, 5
    %v1216 = vrot.slane %v1203, 6
    %v1217 = vrot.slane %v1203, 7
    %v1218 = vrot.slane %v1203, 1
    %v1219 = vrot.slane %v1203, 2
    %v1220 = vrot.slane %v1208, 3
    %v1221 = vrot.slane %v1208, 4
    %v1222 = vrot.slane %v1208, 5
    %v1223 = vrot.slane %v1208, 6
    %v1224 = vrot.slane %v1208, 7
    %v1225 = vrot.slane %v1208, 1
    %v1226 = vrot.slane %v1208, 2
    %v1243 = vadd.f32 %v239, %v1213
    %v1244 = vadd.f32 %v244, %v1214
    %v1245 = vadd.f32 %v249, %v1215
    %v1246 = vadd.f32 %v254, %v1216
    %v1247 = vadd.f32 %v259, %v1217
    %v1248 = vadd.f32 %v264, %v1203
    %v1249 = vadd.f32 %v269, %v1218
    %v1250 = vadd.f32 %v274, %v1219
    %v1251 = vadd.f32 %v279, %v1220
    %v1252 = vadd.f32 %v284, %v1221
    %v1253 = vadd.f32 %v289, %v1222
    %v1254 = vadd.f32 %v294, %v1223
    %v1255 = vadd.f32 %v299, %v1224
    %v1256 = vadd.f32 %v304, %v1208
    %v1257 = vadd.f32 %v309, %v1225
    %v1258 = vadd.f32 %v314, %v1226
    %v1259 = vtanh.pop %v1243
    %v1260 = vtanh.pop %v1244
    %v1261 = vtanh.pop %v1245
    %v1262 = vtanh.pop %v1246
    %v1263 = vtanh.pop %v1247
    %v1264 = vtanh.pop %v1248
    %v1265 = vtanh.pop %v1249
    %v1266 = vtanh.pop %v1250
    %v1267 = vtanh.pop %v1251
    %v1268 = vtanh.pop %v1252
    %v1269 = vtanh.pop %v1253
    %v1270 = vtanh.pop %v1254
    %v1271 = vtanh.pop %v1255
    %v1272 = vtanh.pop %v1256
    %v1273 = vtanh.pop %v1257
    %v1274 = vtanh.pop %v1258
    %v1291 = vrot.slane %v1259, 5
    %v1292 = vrot.slane %v1260, 4
    %v1293 = vsel %vm350, %v1292, %v1291
    %v1294 = vrot.slane %v1261, 3
    %v1295 = vsel %vm353, %v1294, %v1293
    %v1296 = vrot.slane %v1262, 2
    %v1297 = vsel %vm356, %v1296, %v1295
    %v1298 = vrot.slane %v1263, 1
    %v1299 = vsel %vm359, %v1298, %v1297
    %v1300 = vsel %vm362, %v1264, %v1299
    %v1301 = vrot.slane %v1265, 7
    %v1302 = vsel %vm365, %v1301, %v1300
    %v1303 = vrot.slane %v1266, 6
    %v1304 = vsel %vm368, %v1303, %v1302
    %v1305 = vrot.slane %v1267, 5
    %v1306 = vrot.slane %v1268, 4
    %v1307 = vsel %vm350, %v1306, %v1305
    %v1308 = vrot.slane %v1269, 3
    %v1309 = vsel %vm353, %v1308, %v1307
    %v1310 = vrot.slane %v1270, 2
    %v1311 = vsel %vm356, %v1310, %v1309
    %v1312 = vrot.slane %v1271, 1
    %v1313 = vsel %vm359, %v1312, %v1311
    %v1314 = vsel %vm362, %v1272, %v1313
    %v1315 = vrot.slane %v1273, 7
    %v1316 = vsel %vm365, %v1315, %v1314
    %v1317 = vrot.slane %v1274, 6
    %v1318 = vsel %vm368, %v1317, %v1316
    %v1319 = vsel %vm123, %v1304, 0
    %v1321 = vsel %vm123, %v1318, 0
    %1323 = vmatprep.subr.mxu0 0.0
    %1324 = vmatpush1.msra.mxu0 %v96
    %1325 = vmatprep.subr.mxu0 0.0
    %1326 = vmatpush1.msra.mxu0 %v97
    %1327 = vmatprep.subr.mxu0 0.0
    %1328 = vmatpush1.msra.mxu0 %v98
    %1329 = vmatprep.subr.mxu0 0.0
    %1330 = vmatpush1.msra.mxu0 %v99
    %1331 = vmatprep.subr.mxu0 0.0
    %1332 = vmatpush1.msra.mxu0 0.0
    %1333 = vmatprep.subr.mxu0 0.0
    %1334 = vmatpush1.msra.mxu0 0.0
    %1335 = vmatprep.subr.mxu0 0.0
    %1336 = vmatpush1.msra.mxu0 0.0
    %1337 = vmatprep.subr.mxu0 0.0
    %1338 = vmatpush1.msra.mxu0 0.0
    %1339 = vmatprep.subr.mxu0 0.0
    %1340 = vmatpush1.msra.mxu0 0.0
    %1341 = vmatprep.subr.mxu0 0.0
    %1342 = vmatpush1.msra.mxu0 0.0
    %1343 = vmatprep.subr.mxu0 0.0
    %1344 = vmatpush1.msra.mxu0 0.0
    %1345 = vmatprep.subr.mxu0 0.0
    %1346 = vmatpush1.msra.mxu0 0.0
    %1347 = vmatprep.subr.mxu0 0.0
    %1348 = vmatpush1.msra.mxu0 0.0
    %1349 = vmatprep.subr.mxu0 0.0
    %1350 = vmatpush1.msra.mxu0 0.0
    %1351 = vmatprep.subr.mxu0 0.0
    %1352 = vmatpush1.msra.mxu0 0.0
    %1353 = vmatprep.subr.mxu0 0.0
    %1354 = vmatpush1.msra.mxu0 0.0
    %1355 = vmatprep.subr.mxu0 0.0
    %1356 = vmatpush1.msra.mxu0 0.0
    %1357 = vmatprep.subr.mxu0 0.0
    %1358 = vmatpush1.msra.mxu0 0.0
    %1359 = vmatprep.subr.mxu0 0.0
    %1360 = vmatpush1.msra.mxu0 0.0
    %1361 = vmatprep.subr.mxu0 0.0
    %1362 = vmatpush1.msra.mxu0 0.0
    %1363 = vmatprep.subr.mxu0 0.0
    %1364 = vmatpush1.msra.mxu0 0.0
    %1365 = vmatprep.subr.mxu0 0.0
    %1366 = vmatpush1.msra.mxu0 0.0
    %1367 = vmatprep.subr.mxu0 0.0
    %1368 = vmatpush1.msra.mxu0 0.0
    %1369 = vmatprep.subr.mxu0 0.0
    %1370 = vmatpush1.msra.mxu0 0.0
    %1371 = vmatprep.subr.mxu0 0.0
    %1372 = vmatpush1.msra.mxu0 0.0
    %1373 = vmatprep.subr.mxu0 0.0
    %1374 = vmatpush1.msra.mxu0 0.0
    %1375 = vmatprep.subr.mxu0 0.0
    %1376 = vmatpush1.msra.mxu0 0.0
    %1377 = vmatprep.subr.mxu0 0.0
    %1378 = vmatpush1.msra.mxu0 0.0
    %1379 = vmatprep.subr.mxu0 0.0
    %1380 = vmatpush1.msra.mxu0 0.0
    %1381 = vmatprep.subr.mxu0 0.0
    %1382 = vmatpush1.msra.mxu0 0.0
    %1383 = vmatprep.subr.mxu0 0.0
    %1384 = vmatpush1.msra.mxu0 0.0
    %1385 = vmatprep.subr.mxu0 0.0
    %1386 = vmatpush1.msra.mxu0 0.0
    %1387 = vmatprep.mubr.f32.mxu0 0.0
    %1388 = vmatmul.mubr.f32.gmra.mrb[0].mxu0 %v1319
    %v1389 = vpop.f32.mrb[0].mxu0
    %v1390 = vadd.f32 0.0, %v1389
    %v1391 = vpop.f32.mrb[0].mxu0
    %1392 = vmatprep.mubr.f32.mxu0 0.0
    %1393 = vmatmul.mubr.f32.gmra.mrb[0].mxu0 %v1321
    %v1394 = vpop.f32.mrb[0].mxu0
    %v1395 = vadd.f32 0.0, %v1394
    %v1396 = vpop.f32.mrb[0].mxu0
    %1397 = vdwg.mxu0
    %v1400 = vrot.slane %v1390, 2
    %v1401 = vrot.slane %v1390, 3
    %v1402 = vrot.slane %v1390, 4
    %v1403 = vrot.slane %v1390, 5
    %v1404 = vrot.slane %v1390, 6
    %v1405 = vrot.slane %v1390, 7
    %v1406 = vrot.slane %v1390, 1
    %v1407 = vrot.slane %v1395, 2
    %v1408 = vrot.slane %v1395, 3
    %v1409 = vrot.slane %v1395, 4
    %v1410 = vrot.slane %v1395, 5
    %v1411 = vrot.slane %v1395, 6
    %v1412 = vrot.slane %v1395, 7
    %v1413 = vrot.slane %v1395, 1
    %v1430 = vadd.f32 %v239, %v1400
    %v1431 = vadd.f32 %v244, %v1401
    %v1432 = vadd.f32 %v249, %v1402
    %v1433 = vadd.f32 %v254, %v1403
    %v1434 = vadd.f32 %v259, %v1404
    %v1435 = vadd.f32 %v264, %v1405
    %v1436 = vadd.f32 %v269, %v1390
    %v1437 = vadd.f32 %v274, %v1406
    %v1438 = vadd.f32 %v279, %v1407
    %v1439 = vadd.f32 %v284, %v1408
    %v1440 = vadd.f32 %v289, %v1409
    %v1441 = vadd.f32 %v294, %v1410
    %v1442 = vadd.f32 %v299, %v1411
    %v1443 = vadd.f32 %v304, %v1412
    %v1444 = vadd.f32 %v309, %v1395
    %v1445 = vadd.f32 %v314, %v1413
    %v1446 = vtanh.pop %v1430
    %v1447 = vtanh.pop %v1431
    %v1448 = vtanh.pop %v1432
    %v1449 = vtanh.pop %v1433
    %v1450 = vtanh.pop %v1434
    %v1451 = vtanh.pop %v1435
    %v1452 = vtanh.pop %v1436
    %v1453 = vtanh.pop %v1437
    %v1454 = vtanh.pop %v1438
    %v1455 = vtanh.pop %v1439
    %v1456 = vtanh.pop %v1440
    %v1457 = vtanh.pop %v1441
    %v1458 = vtanh.pop %v1442
    %v1459 = vtanh.pop %v1443
    %v1460 = vtanh.pop %v1444
    %v1461 = vtanh.pop %v1445
    %v1478 = vrot.slane %v1446, 6
    %v1479 = vrot.slane %v1447, 5
    %v1480 = vsel %vm350, %v1479, %v1478
    %v1481 = vrot.slane %v1448, 4
    %v1482 = vsel %vm353, %v1481, %v1480
    %v1483 = vrot.slane %v1449, 3
    %v1484 = vsel %vm356, %v1483, %v1482
    %v1485 = vrot.slane %v1450, 2
    %v1486 = vsel %vm359, %v1485, %v1484
    %v1487 = vrot.slane %v1451, 1
    %v1488 = vsel %vm362, %v1487, %v1486
    %v1489 = vsel %vm365, %v1452, %v1488
    %v1490 = vrot.slane %v1453, 7
    %v1491 = vsel %vm368, %v1490, %v1489
    %v1492 = vrot.slane %v1454, 6
    %v1493 = vrot.slane %v1455, 5
    %v1494 = vsel %vm350, %v1493, %v1492
    %v1495 = vrot.slane %v1456, 4
    %v1496 = vsel %vm353, %v1495, %v1494
    %v1497 = vrot.slane %v1457, 3
    %v1498 = vsel %vm356, %v1497, %v1496
    %v1499 = vrot.slane %v1458, 2
    %v1500 = vsel %vm359, %v1499, %v1498
    %v1501 = vrot.slane %v1459, 1
    %v1502 = vsel %vm362, %v1501, %v1500
    %v1503 = vsel %vm365, %v1460, %v1502
    %v1504 = vrot.slane %v1461, 7
    %v1505 = vsel %vm368, %v1504, %v1503
    %v1506 = vsel %vm123, %v1491, 0
    %v1508 = vsel %vm123, %v1505, 0
    %1510 = vmatprep.subr.mxu0 0.0
    %1511 = vmatpush1.msra.mxu0 %v96
    %1512 = vmatprep.subr.mxu0 0.0
    %1513 = vmatpush1.msra.mxu0 %v97
    %1514 = vmatprep.subr.mxu0 0.0
    %1515 = vmatpush1.msra.mxu0 %v98
    %1516 = vmatprep.subr.mxu0 0.0
    %1517 = vmatpush1.msra.mxu0 %v99
    %1518 = vmatprep.subr.mxu0 0.0
    %1519 = vmatpush1.msra.mxu0 0.0
    %1520 = vmatprep.subr.mxu0 0.0
    %1521 = vmatpush1.msra.mxu0 0.0
    %1522 = vmatprep.subr.mxu0 0.0
    %1523 = vmatpush1.msra.mxu0 0.0
    %1524 = vmatprep.subr.mxu0 0.0
    %1525 = vmatpush1.msra.mxu0 0.0
    %1526 = vmatprep.subr.mxu0 0.0
    %1527 = vmatpush1.msra.mxu0 0.0
    %1528 = vmatprep.subr.mxu0 0.0
    %1529 = vmatpush1.msra.mxu0 0.0
    %1530 = vmatprep.subr.mxu0 0.0
    %1531 = vmatpush1.msra.mxu0 0.0
    %1532 = vmatprep.subr.mxu0 0.0
    %1533 = vmatpush1.msra.mxu0 0.0
    %1534 = vmatprep.subr.mxu0 0.0
    %1535 = vmatpush1.msra.mxu0 0.0
    %1536 = vmatprep.subr.mxu0 0.0
    %1537 = vmatpush1.msra.mxu0 0.0
    %1538 = vmatprep.subr.mxu0 0.0
    %1539 = vmatpush1.msra.mxu0 0.0
    %1540 = vmatprep.subr.mxu0 0.0
    %1541 = vmatpush1.msra.mxu0 0.0
    %1542 = vmatprep.subr.mxu0 0.0
    %1543 = vmatpush1.msra.mxu0 0.0
    %1544 = vmatprep.subr.mxu0 0.0
    %1545 = vmatpush1.msra.mxu0 0.0
    %1546 = vmatprep.subr.mxu0 0.0
    %1547 = vmatpush1.msra.mxu0 0.0
    %1548 = vmatprep.subr.mxu0 0.0
    %1549 = vmatpush1.msra.mxu0 0.0
    %1550 = vmatprep.subr.mxu0 0.0
    %1551 = vmatpush1.msra.mxu0 0.0
    %1552 = vmatprep.subr.mxu0 0.0
    %1553 = vmatpush1.msra.mxu0 0.0
    %1554 = vmatprep.subr.mxu0 0.0
    %1555 = vmatpush1.msra.mxu0 0.0
    %1556 = vmatprep.subr.mxu0 0.0
    %1557 = vmatpush1.msra.mxu0 0.0
    %1558 = vmatprep.subr.mxu0 0.0
    %1559 = vmatpush1.msra.mxu0 0.0
    %1560 = vmatprep.subr.mxu0 0.0
    %1561 = vmatpush1.msra.mxu0 0.0
    %1562 = vmatprep.subr.mxu0 0.0
    %1563 = vmatpush1.msra.mxu0 0.0
    %1564 = vmatprep.subr.mxu0 0.0
    %1565 = vmatpush1.msra.mxu0 0.0
    %1566 = vmatprep.subr.mxu0 0.0
    %1567 = vmatpush1.msra.mxu0 0.0
    %1568 = vmatprep.subr.mxu0 0.0
    %1569 = vmatpush1.msra.mxu0 0.0
    %1570 = vmatprep.subr.mxu0 0.0
    %1571 = vmatpush1.msra.mxu0 0.0
    %1572 = vmatprep.subr.mxu0 0.0
    %1573 = vmatpush1.msra.mxu0 0.0
    %1574 = vmatprep.mubr.f32.mxu0 0.0
    %1575 = vmatmul.mubr.f32.gmra.mrb[0].mxu0 %v1506
    %v1576 = vpop.f32.mrb[0].mxu0
    %v1577 = vadd.f32 0.0, %v1576
    %v1578 = vpop.f32.mrb[0].mxu0
    %1579 = vmatprep.mubr.f32.mxu0 0.0
    %1580 = vmatmul.mubr.f32.gmra.mrb[0].mxu0 %v1508
    %v1581 = vpop.f32.mrb[0].mxu0
    %v1582 = vadd.f32 0.0, %v1581
    %v1583 = vpop.f32.mrb[0].mxu0
    %1584 = vdwg.mxu0
    %v1587 = vrot.slane %v1577, 1
    %v1588 = vrot.slane %v1577, 2
    %v1589 = vrot.slane %v1577, 3
    %v1590 = vrot.slane %v1577, 4
    %v1591 = vrot.slane %v1577, 5
    %v1592 = vrot.slane %v1577, 6
    %v1593 = vrot.slane %v1577, 7
    %v1594 = vrot.slane %v1582, 1
    %v1595 = vrot.slane %v1582, 2
    %v1596 = vrot.slane %v1582, 3
    %v1597 = vrot.slane %v1582, 4
    %v1598 = vrot.slane %v1582, 5
    %v1599 = vrot.slane %v1582, 6
    %v1600 = vrot.slane %v1582, 7
    %v1617 = vadd.f32 %v239, %v1587
    %v1618 = vadd.f32 %v244, %v1588
    %v1619 = vadd.f32 %v249, %v1589
    %v1620 = vadd.f32 %v254, %v1590
    %v1621 = vadd.f32 %v259, %v1591
    %v1622 = vadd.f32 %v264, %v1592
    %v1623 = vadd.f32 %v269, %v1593
    %v1624 = vadd.f32 %v274, %v1577
    %v1625 = vadd.f32 %v279, %v1594
    %v1626 = vadd.f32 %v284, %v1595
    %v1627 = vadd.f32 %v289, %v1596
    %v1628 = vadd.f32 %v294, %v1597
    %v1629 = vadd.f32 %v299, %v1598
    %v1630 = vadd.f32 %v304, %v1599
    %v1631 = vadd.f32 %v309, %v1600
    %v1632 = vadd.f32 %v314, %v1582
    %v1633 = vtanh.pop %v1617
    %v1634 = vtanh.pop %v1618
    %v1635 = vtanh.pop %v1619
    %v1636 = vtanh.pop %v1620
    %v1637 = vtanh.pop %v1621
    %v1638 = vtanh.pop %v1622
    %v1639 = vtanh.pop %v1623
    %v1640 = vtanh.pop %v1624
    %v1641 = vtanh.pop %v1625
    %v1642 = vtanh.pop %v1626
    %v1643 = vtanh.pop %v1627
    %v1644 = vtanh.pop %v1628
    %v1645 = vtanh.pop %v1629
    %v1646 = vtanh.pop %v1630
    %v1647 = vtanh.pop %v1631
    %v1648 = vtanh.pop %v1632
    %v1649 = vld [vmem:[#allocation10] sm:$0xff]
    %v1650 = vld [vmem:[#allocation10 + $0x8] sm:$0xff]
    %v1651 = vld [vmem:[#allocation10 + $0x10] sm:$0xff]
    %v1652 = vld [vmem:[#allocation10 + $0x18] sm:$0xff]
    %v1661 = vrot.slane %v1633, 7
    %v1662 = vrot.slane %v1634, 6
    %v1663 = vsel %vm350, %v1662, %v1661
    %v1664 = vrot.slane %v1635, 5
    %v1665 = vsel %vm353, %v1664, %v1663
    %v1666 = vrot.slane %v1636, 4
    %v1667 = vsel %vm356, %v1666, %v1665
    %v1668 = vrot.slane %v1637, 3
    %v1669 = vsel %vm359, %v1668, %v1667
    %v1670 = vrot.slane %v1638, 2
    %v1671 = vsel %vm362, %v1670, %v1669
    %v1672 = vrot.slane %v1639, 1
    %v1673 = vsel %vm365, %v1672, %v1671
    %v1674 = vsel %vm368, %v1640, %v1673
    %v1675 = vsel %vm123, %v1674, 0
    %1677 = vmatprep.subr.mxu0 0.0
    %1678 = vmatpush1.msra.mxu0 %v1649
    %1679 = vmatprep.subr.mxu0 0.0
    %1680 = vmatpush1.msra.mxu0 %v1650
    %1681 = vmatprep.subr.mxu0 0.0
    %1682 = vmatpush1.msra.mxu0 %v1651
    %1683 = vmatprep.subr.mxu0 0.0
    %1684 = vmatpush1.msra.mxu0 %v1652
    %1685 = vmatprep.subr.mxu0 0.0
    %1686 = vmatpush1.msra.mxu0 0.0
    %1687 = vmatprep.subr.mxu0 0.0
    %1688 = vmatpush1.msra.mxu0 0.0
    %1689 = vmatprep.subr.mxu0 0.0
    %1690 = vmatpush1.msra.mxu0 0.0
    %1691 = vmatprep.subr.mxu0 0.0
    %1692 = vmatpush1.msra.mxu0 0.0
    %1693 = vmatprep.subr.mxu0 0.0
    %1694 = vmatpush1.msra.mxu0 0.0
    %1695 = vmatprep.subr.mxu0 0.0
    %1696 = vmatpush1.msra.mxu0 0.0
    %1697 = vmatprep.subr.mxu0 0.0
    %1698 = vmatpush1.msra.mxu0 0.0
    %1699 = vmatprep.subr.mxu0 0.0
    %1700 = vmatpush1.msra.mxu0 0.0
    %1701 = vmatprep.subr.mxu0 0.0
    %1702 = vmatpush1.msra.mxu0 0.0
    %1703 = vmatprep.subr.mxu0 0.0
    %1704 = vmatpush1.msra.mxu0 0.0
    %1705 = vmatprep.subr.mxu0 0.0
    %1706 = vmatpush1.msra.mxu0 0.0
    %1707 = vmatprep.subr.mxu0 0.0
    %1708 = vmatpush1.msra.mxu0 0.0
    %1709 = vmatprep.subr.mxu0 0.0
    %1710 = vmatpush1.msra.mxu0 0.0
    %1711 = vmatprep.subr.mxu0 0.0
    %1712 = vmatpush1.msra.mxu0 0.0
    %1713 = vmatprep.subr.mxu0 0.0
    %1714 = vmatpush1.msra.mxu0 0.0
    %1715 = vmatprep.subr.mxu0 0.0
    %1716 = vmatpush1.msra.mxu0 0.0
    %1717 = vmatprep.subr.mxu0 0.0
    %1718 = vmatpush1.msra.mxu0 0.0
    %1719 = vmatprep.subr.mxu0 0.0
    %1720 = vmatpush1.msra.mxu0 0.0
    %1721 = vmatprep.subr.mxu0 0.0
    %1722 = vmatpush1.msra.mxu0 0.0
    %1723 = vmatprep.subr.mxu0 0.0
    %1724 = vmatpush1.msra.mxu0 0.0
    %1725 = vmatprep.subr.mxu0 0.0
    %1726 = vmatpush1.msra.mxu0 0.0
    %1727 = vmatprep.subr.mxu0 0.0
    %1728 = vmatpush1.msra.mxu0 0.0
    %1729 = vmatprep.subr.mxu0 0.0
    %1730 = vmatpush1.msra.mxu0 0.0
    %1731 = vmatprep.subr.mxu0 0.0
    %1732 = vmatpush1.msra.mxu0 0.0
    %1733 = vmatprep.subr.mxu0 0.0
    %1734 = vmatpush1.msra.mxu0 0.0
    %1735 = vmatprep.subr.mxu0 0.0
    %1736 = vmatpush1.msra.mxu0 0.0
    %1737 = vmatprep.subr.mxu0 0.0
    %1738 = vmatpush1.msra.mxu0 0.0
    %1739 = vmatprep.subr.mxu0 0.0
    %1740 = vmatpush1.msra.mxu0 0.0
    %1741 = vmatprep.mubr.f32.mxu0 0.0
    %1742 = vmatmul.mubr.f32.gmra.mrb[0].mxu0 %v1675
    %v1743 = vpop.f32.mrb[0].mxu0
    %v1744 = vadd.f32 0.0, %v1743
    %v1745 = vpop.f32.mrb[0].mxu0
    %1746 = vdwg.mxu0
    %v1755 = vrot.slane %v1641, 7
    %v1756 = vrot.slane %v1642, 6
    %v1757 = vsel %vm350, %v1756, %v1755
    %v1758 = vrot.slane %v1643, 5
    %v1759 = vsel %vm353, %v1758, %v1757
    %v1760 = vrot.slane %v1644, 4
    %v1761 = vsel %vm356, %v1760, %v1759
    %v1762 = vrot.slane %v1645, 3
    %v1763 = vsel %vm359, %v1762, %v1761
    %v1764 = vrot.slane %v1646, 2
    %v1765 = vsel %vm362, %v1764, %v1763
    %v1766 = vrot.slane %v1647, 1
    %v1767 = vsel %vm365, %v1766, %v1765
    %v1768 = vsel %vm368, %v1648, %v1767
    %v1770 = vmul.f32 %v1744, %v1768
    %v1771 = vsel %vm123, %v1770, 0.0
    %1772 = vadd.xlane.f32.xlu0 %v1771
    %v1773 = vpop.xlane.xlu0 %1772
    %1774 = vst [vmem:[#allocation11] sm:$0xff] %v1773
    // Predicated region
    $region46: #{tpu_custom_call.1} parent=1 // pred_check
      _
    $region47: #{tpu_custom_call.1} parent=1 // pred_check_branch
      %1776 = sbr.rel (0) target = $region49
    $region48: #{tpu_custom_call.1} parent=1 // pred_region
      %s1778 = ssub.s32 128, 128
      %1779 = vsyncadd [#allocation4], %s1778
      %s1781 = sshll.u32 [#allocation11], 4
      %s1782 = int_to_ptr.vmem [resolvable:$true] %s1781
      %1784 = dma.vmem_to_hbm [thread:$0]  %s1782, 128, %s6, [#allocation4]
    $region49: #{tpu_custom_call.1} parent=1 // pred_fallthru
      _
    // Predicated region
    $region50: #{tpu_custom_call.1} parent=1 // pred_check
      _
    $region51: #{tpu_custom_call.1} parent=1 // pred_check_branch
      %1786 = sbr.rel (0) target = $region53
    $region52: #{tpu_custom_call.1} parent=1 // pred_region
      %1787 = dma.done [#allocation4], 128
    $region53: #{tpu_custom_call.1} parent=1 // pred_fallthru
      _
    %1788 = vsyncpa [#allocation3], 1
    %1789 = vsyncpa [#allocation6], 1
    %1790 = vsyncpa [#allocation9], 1
    %1791 = vsyncpa [#allocation4], 1

</llo_original>
